<compile_context>
chip_gen: v5e
topology: v5e:2x2
jax: 0.10.0
libtpu: 0.0.40
codegen_flags: <defaults>
</compile_context>

<pallas_src>
import jax
import jax.numpy as jnp
from jax.experimental import pallas as pl
from jax.experimental.pallas import tpu as pltpu

EPS = 1e-5


def _fold_bn(w, gamma, beta, mean, var):
    """Fold inference-mode BatchNorm into a conv weight whose LAST axis is out-channels."""
    scale = gamma / jnp.sqrt(var + EPS)
    return (w * scale).astype(jnp.float32), (beta - mean * scale).astype(jnp.float32)


def _halo_masks(H, W):
    """(9, H*W) float masks: 1 where the (oy, ox)-shifted source pixel is in-image."""
    h = jnp.arange(H)[:, None]
    w = jnp.arange(W)[None, :]
    rows = []
    for oy in (-1, 0, 1):
        for ox in (-1, 0, 1):
            valid = ((h + oy >= 0) & (h + oy < H) & (w + ox >= 0) & (w + ox < W))
            rows.append(valid.reshape(H * W).astype(jnp.float32))
    return jnp.stack(rows, axis=0)


def _make_kernel(N, H, W, Cin, Cmid, lpad):
    HW = H * W
    L = N * HW                     # batch folded onto the lane axis
    P = W + 1                      # max |flattened 3x3 offset| = W + 1
    HP = jax.lax.Precision.HIGHEST

    def kernel(x_ref, w1_ref, b1_ref, w2_ref, b2_ref, wf_ref, bf_ref, mask_ref,
               o_ref, xcat_ref, halo_ref, stack_ref, cat_ref):
        # ---- Pack batch along lanes: (N, Cin, HW) -> (Cin, N*HW), aligned copies ----
        for n in range(N):
            xcat_ref[:, n * HW:(n + 1) * HW] = x_ref[n]
        x = xcat_ref[...]                                            # (Cin, L)

        # ---- Conv1x1 (in -> mid) + folded BN + ReLU ---------------------------------
        h1 = jnp.dot(w1_ref[...], x, preferred_element_type=jnp.float32, precision=HP)
        h1 = jnp.maximum(h1 + b1_ref[...], 0.0)                      # (Cmid, L)

        # ---- Conv3x3 (mid -> mid, pad=1): im2col stack + ONE K=9*Cmid matmul --------
        # Interior store is lane-tile aligned (offset lpad); only the two (Cmid, W+1)
        # halo slivers a shifted read can touch are zeroed (keeps NaN garbage out of
        # the 0*x mask products).  Off-centre taps carry full row+col validity masks
        # (also covers the image-0/image-1 seam of the lane-concatenated batch).
        halo_ref[:, lpad - P:lpad] = jnp.zeros((Cmid, P), jnp.float32)
        halo_ref[:, lpad + L:lpad + L + P] = jnp.zeros((Cmid, P), jnp.float32)
        halo_ref[:, lpad:lpad + L] = h1

        stack_ref[4 * Cmid:5 * Cmid, :] = h1                         # centre tap, no mask
        for k in range(9):
            if k == 4:
                continue
            oy, ox = k // 3 - 1, k % 3 - 1
            start = lpad + oy * W + ox                               # static lane offset
            shifted = halo_ref[:, start:start + L] * mask_ref[k:k + 1, :]
            stack_ref[k * Cmid:(k + 1) * Cmid, :] = shifted

        h2 = jnp.dot(w2_ref[...], stack_ref[...],                    # (Cmid, 9*Cmid)@(9*Cmid, L)
                     preferred_element_type=jnp.float32, precision=HP)
        h2 = jnp.maximum(h2 + b2_ref[...], 0.0)                      # (Cmid, L)

        # ---- Conv1x1 (mid -> out) + shortcut 1x1 (in -> out): one K-concat matmul ---
        cat_ref[0:Cmid, :] = h2
        cat_ref[Cmid:Cmid + Cin, :] = x
        out = jnp.dot(wf_ref[...], cat_ref[...],                     # (Cout, Cmid+Cin)@(., L)
                      preferred_element_type=jnp.float32, precision=HP)
        out = jnp.maximum(out + bf_ref[...], 0.0)                    # (Cout, L)

        # ---- Unpack batch: lane-aligned 256-wide slices -> per-image output blocks --
        for n in range(N):
            o_ref[n] = out[:, n * HW:(n + 1) * HW]

    return kernel


@jax.jit
def bottleneck_forward(x_nchw, params):
    """Fused Bottleneck forward.  x_nchw: (N, Cin, H, W) f32 -> (N, Cout, H, W) f32."""
    w1, b1, w2, b2, w3, b3, ws, bs = params
    N, Cin, H, W = x_nchw.shape
    Cmid = w2.shape[2]
    Cout = w3.shape[1]
    HW = H * W
    L = N * HW
    LPAD = ((W + 1 + 127) // 128) * 128      # aligned interior offset in the halo row

    # Cold-path glue: kernel-layout weights (out-channels leading), fused biases, masks.
    w1t = w1.T                                                      # (Cmid, Cin)
    w2k = jnp.transpose(w2, (3, 0, 1, 2)).reshape(Cmid, 9 * Cmid)   # (O, tap*I) K-stacked
    wf = jnp.concatenate([w3.T, ws.T], axis=1)                      # (Cout, Cmid+Cin)
    b1c = b1.reshape(Cmid, 1)
    b2c = b2.reshape(Cmid, 1)
    bfc = (b3 + bs).reshape(Cout, 1)                                # pre-summed biases
    masks = jnp.tile(_halo_masks(H, W), (1, N))                     # (9, N*HW), lane-dense

    # Free reshape: channels ride the sublane axis, HW rides the lane axis per image.
    x = x_nchw.reshape(N, Cin, HW)

    full = lambda a: pl.BlockSpec(a.shape, lambda i: (0,) * a.ndim)

    out = pl.pallas_call(
        _make_kernel(N, H, W, Cin, Cmid, LPAD),
        out_shape=jax.ShapeDtypeStruct((N, Cout, HW), jnp.float32),
        grid=(1,),                                                  # whole batch in one step
        in_specs=[
            full(x),
            full(w1t), full(b1c), full(w2k), full(b2c),
            full(wf), full(bfc), full(masks),
        ],
        out_specs=pl.BlockSpec((N, Cout, HW), lambda i: (0, 0, 0)),
        scratch_shapes=[
            pltpu.VMEM((Cin, L), jnp.float32),                      # lane-packed input
            pltpu.VMEM((Cmid, LPAD + L + LPAD), jnp.float32),       # zero-haloed h1 row
            pltpu.VMEM((9 * Cmid, L), jnp.float32),                 # im2col K-stack
            pltpu.VMEM((Cmid + Cin, L), jnp.float32),               # [h2 ; x] K-concat
        ],
    )(x, w1t, b1c, w2k, b2c, wf, bfc, masks)

    return out.reshape(N, Cout, H, W)


def bottleneck_reference(x, params):
    """Pure-JAX (XLA) reference using the same folded parameters, NCHW layout."""
    w1, b1, w2, b2, w3, b3, ws, bs = params
    hp = jax.lax.Precision.HIGHEST
    h = jnp.einsum('nchw,cd->ndhw', x, w1, precision=hp) + b1[None, :, None, None]
    h = jnp.maximum(h, 0.0)
    h = jax.lax.conv_general_dilated(
        h, w2, window_strides=(1, 1), padding='SAME',
        dimension_numbers=('NCHW', 'HWIO', 'NCHW'), precision=hp)
    h = jnp.maximum(h + b2[None, :, None, None], 0.0)
    main = jnp.einsum('nchw,cd->ndhw', h, w3, precision=hp) + b3[None, :, None, None]
    short = jnp.einsum('nchw,cd->ndhw', x, ws, precision=hp) + bs[None, :, None, None]
    return jnp.maximum(main + short, 0.0)


def make_params(key, in_channels, out_channels):
    """Deterministic synthetic Conv+BN(inference) weights; BN folded into the convs."""
    mid = out_channels // 4
    ks = jax.random.split(key, 8)

    def bn(k, c):
        kg, kb, km = jax.random.split(k, 3)
        gamma = 1.0 + 0.1 * jax.random.normal(kg, (c,), jnp.float32)
        beta = 0.1 * jax.random.normal(kb, (c,), jnp.float32)
        mean = 0.1 * jax.random.normal(km, (c,), jnp.float32)
        var = jnp.ones((c,), jnp.float32)
        return gamma, beta, mean, var

    # Conv1: 1x1 in->mid  (layout (Cin, Cmid), out-channels last)
    w1 = 0.2 * jax.random.normal(ks[0], (in_channels, mid), jnp.float32)
    w1, b1 = _fold_bn(w1, *bn(ks[1], mid))
    # Conv2: 3x3 mid->mid (HWIO)
    w2 = 0.2 * jax.random.normal(ks[2], (3, 3, mid, mid), jnp.float32)
    w2, b2 = _fold_bn(w2, *bn(ks[3], mid))
    # Conv3: 1x1 mid->out
    w3 = 0.2 * jax.random.normal(ks[4], (mid, out_channels), jnp.float32)
    w3, b3 = _fold_bn(w3, *bn(ks[5], out_channels))
    # Shortcut: 1x1 in->out
    ws = 0.2 * jax.random.normal(ks[6], (in_channels, out_channels), jnp.float32)
    ws, bs = _fold_bn(ws, *bn(ks[7], out_channels))

    return (w1, b1, w2, b2, w3, b3, ws, bs)


if __name__ == "__main__":
    key = jax.random.PRNGKey(0)
    kx, kp = jax.random.split(key)

    N, Cin, H, W = 2, 4, 16, 16
    Cout = 16

    x = jax.random.normal(kx, (N, Cin, H, W), jnp.float32)
    params = make_params(kp, Cin, Cout)

    y = bottleneck_forward(x, params)
    jax.block_until_ready(y)
    assert y.shape == (N, Cout, H, W)

    # Tight tolerance check against a pure-JAX reference (same folded params).
    y_ref = bottleneck_reference(x, params)
    err = float(jnp.max(jnp.abs(y - y_ref)))
    assert err < 1e-4, f"kernel/reference mismatch: max abs err = {err}"

    print("KERNEL_OK")
</pallas_src>

<mosaic_0001>
module attributes {stable_mosaic.version = 11 : i64} {
  func.func @kernel(%arg0: i32, %arg1: memref<2x4x256xf32, #tpu.memory_space<vmem>>, %arg2: memref<4x4xf32, #tpu.memory_space<vmem>>, %arg3: memref<4x1xf32, #tpu.memory_space<vmem>>, %arg4: memref<4x36xf32, #tpu.memory_space<vmem>>, %arg5: memref<4x1xf32, #tpu.memory_space<vmem>>, %arg6: memref<16x8xf32, #tpu.memory_space<vmem>>, %arg7: memref<16x1xf32, #tpu.memory_space<vmem>>, %arg8: memref<9x512xf32, #tpu.memory_space<vmem>>, %arg9: memref<2x16x256xf32, #tpu.memory_space<vmem>>, %arg10: memref<4x512xf32, #tpu.memory_space<vmem>>, %arg11: memref<4x768xf32, #tpu.memory_space<vmem>>, %arg12: memref<36x512xf32, #tpu.memory_space<vmem>>, %arg13: memref<8x512xf32, #tpu.memory_space<vmem>>) attributes {dimension_semantics = [#tpu.dimension_semantics<arbitrary>], iteration_bounds = array<i64: 1>, scalar_prefetch = 0 : i64, scratch_operands = 4 : i64, tpu.core_type = #tpu.core_type<tc>, window_params = [{pipeline_mode = #tpu.pipeline_mode<synchronous>, transform_indices = @transform_0, window_bounds = array<i64: 2, 4, 256>}, {pipeline_mode = #tpu.pipeline_mode<synchronous>, transform_indices = @transform_1, window_bounds = array<i64: 4, 4>}, {pipeline_mode = #tpu.pipeline_mode<synchronous>, transform_indices = @transform_2, window_bounds = array<i64: 4, 1>}, {pipeline_mode = #tpu.pipeline_mode<synchronous>, transform_indices = @transform_3, window_bounds = array<i64: 4, 36>}, {pipeline_mode = #tpu.pipeline_mode<synchronous>, transform_indices = @transform_4, window_bounds = array<i64: 4, 1>}, {pipeline_mode = #tpu.pipeline_mode<synchronous>, transform_indices = @transform_5, window_bounds = array<i64: 16, 8>}, {pipeline_mode = #tpu.pipeline_mode<synchronous>, transform_indices = @transform_6, window_bounds = array<i64: 16, 1>}, {pipeline_mode = #tpu.pipeline_mode<synchronous>, transform_indices = @transform_7, window_bounds = array<i64: 9, 512>}, {pipeline_mode = #tpu.pipeline_mode<synchronous>, transform_indices = @transform_8, window_bounds = array<i64: 2, 16, 256>}]} {
    %c0 = arith.constant 0 : index
    %c0_0 = arith.constant 0 : index
    %c0_1 = arith.constant 0 : index
    %0 = vector.load %arg1[%c0, %c0_0, %c0_1] : memref<2x4x256xf32, #tpu.memory_space<vmem>>, vector<1x4x256xf32>
    %1 = vector.shape_cast %0 : vector<1x4x256xf32> to vector<4x256xf32>
    %c0_2 = arith.constant 0 : index
    %c0_3 = arith.constant 0 : index
    %2 = vector.load %arg10[%c0_2, %c0_3] : memref<4x512xf32, #tpu.memory_space<vmem>>, vector<4x256xf32>
    tpu.vector_store %arg10[%c0_2, %c0_3], %1 {strides = array<i32>} : memref<4x512xf32, #tpu.memory_space<vmem>>, vector<4x256xf32>,
    %c1 = arith.constant 1 : index
    %c0_4 = arith.constant 0 : index
    %c0_5 = arith.constant 0 : index
    %3 = vector.load %arg1[%c1, %c0_4, %c0_5] : memref<2x4x256xf32, #tpu.memory_space<vmem>>, vector<1x4x256xf32>
    %4 = vector.shape_cast %3 : vector<1x4x256xf32> to vector<4x256xf32>
    %c0_6 = arith.constant 0 : index
    %c256 = arith.constant 256 : index
    %5 = vector.load %arg10[%c0_6, %c256] : memref<4x512xf32, #tpu.memory_space<vmem>>, vector<4x256xf32>
    tpu.vector_store %arg10[%c0_6, %c256], %4 {strides = array<i32>} : memref<4x512xf32, #tpu.memory_space<vmem>>, vector<4x256xf32>,
    %c0_7 = arith.constant 0 : index
    %c0_8 = arith.constant 0 : index
    %6 = vector.load %arg10[%c0_7, %c0_8] : memref<4x512xf32, #tpu.memory_space<vmem>>, vector<4x512xf32>
    %c0_9 = arith.constant 0 : index
    %c0_10 = arith.constant 0 : index
    %7 = vector.load %arg2[%c0_9, %c0_10] : memref<4x4xf32, #tpu.memory_space<vmem>>, vector<4x4xf32>
    %cst = arith.constant dense<0.000000e+00> : vector<4x512xf32>
    %8 = tpu.matmul %7, %6, %cst {dimension_numbers = #tpu.dot_dimension_numbers<[1], [0], [0], [1], [0, 0, 1, 1], [], []>, precision = #tpu.contract_precision<fp32>} : vector<4x4xf32>, vector<4x512xf32>, vector<4x512xf32> -> vector<4x512xf32>
    %c0_11 = arith.constant 0 : index
    %c0_12 = arith.constant 0 : index
    %9 = vector.load %arg3[%c0_11, %c0_12] : memref<4x1xf32, #tpu.memory_space<vmem>>, vector<4x1xf32>
    %10 = vector.broadcast %9 : vector<4x1xf32> to vector<4x512xf32>
    %11 = arith.addf %8, %10 : vector<4x512xf32>
    %cst_13 = arith.constant 0.000000e+00 : f32
    %12 = vector.broadcast %cst_13 : f32 to vector<4x512xf32>
    %13 = arith.maximumf %11, %12 : vector<4x512xf32>
    %cst_14 = arith.constant 0.000000e+00 : f32
    %14 = vector.broadcast %cst_14 : f32 to vector<4x17xf32>
    %c0_15 = arith.constant 0 : index
    %c111 = arith.constant 111 : index
    %15 = vector.load %arg11[%c0_15, %c111] : memref<4x768xf32, #tpu.memory_space<vmem>>, vector<4x17xf32>
    tpu.vector_store %arg11[%c0_15, %c111], %14 {strides = array<i32>} : memref<4x768xf32, #tpu.memory_space<vmem>>, vector<4x17xf32>,
    %cst_16 = arith.constant 0.000000e+00 : f32
    %16 = vector.broadcast %cst_16 : f32 to vector<4x17xf32>
    %c0_17 = arith.constant 0 : index
    %c640 = arith.constant 640 : index
    %17 = vector.load %arg11[%c0_17, %c640] : memref<4x768xf32, #tpu.memory_space<vmem>>, vector<4x17xf32>
    tpu.vector_store %arg11[%c0_17, %c640], %16 {strides = array<i32>} : memref<4x768xf32, #tpu.memory_space<vmem>>, vector<4x17xf32>,
    %c0_18 = arith.constant 0 : index
    %c128 = arith.constant 128 : index
    %18 = vector.load %arg11[%c0_18, %c128] : memref<4x768xf32, #tpu.memory_space<vmem>>, vector<4x512xf32>
    tpu.vector_store %arg11[%c0_18, %c128], %13 {strides = array<i32>} : memref<4x768xf32, #tpu.memory_space<vmem>>, vector<4x512xf32>,
    %c16 = arith.constant 16 : index
    %c0_19 = arith.constant 0 : index
    %19 = vector.load %arg12[%c16, %c0_19] : memref<36x512xf32, #tpu.memory_space<vmem>>, vector<4x512xf32>
    tpu.vector_store %arg12[%c16, %c0_19], %13 {strides = array<i32>} : memref<36x512xf32, #tpu.memory_space<vmem>>, vector<4x512xf32>,
    %c0_20 = arith.constant 0 : index
    %c111_21 = arith.constant 111 : index
    %20 = vector.load %arg11[%c0_20, %c111_21] : memref<4x768xf32, #tpu.memory_space<vmem>>, vector<4x512xf32>
    %c0_22 = arith.constant 0 : index
    %c0_23 = arith.constant 0 : index
    %21 = vector.load %arg8[%c0_22, %c0_23] : memref<9x512xf32, #tpu.memory_space<vmem>>, vector<1x512xf32>
    %22 = vector.broadcast %21 : vector<1x512xf32> to vector<4x512xf32>
    %23 = arith.mulf %20, %22 : vector<4x512xf32>
    %c0_24 = arith.constant 0 : index
    %c0_25 = arith.constant 0 : index
    %24 = vector.load %arg12[%c0_24, %c0_25] : memref<36x512xf32, #tpu.memory_space<vmem>>, vector<4x512xf32>
    tpu.vector_store %arg12[%c0_24, %c0_25], %23 {strides = array<i32>} : memref<36x512xf32, #tpu.memory_space<vmem>>, vector<4x512xf32>,
    %c0_26 = arith.constant 0 : index
    %c112 = arith.constant 112 : index
    %25 = vector.load %arg11[%c0_26, %c112] : memref<4x768xf32, #tpu.memory_space<vmem>>, vector<4x512xf32>
    %c1_27 = arith.constant 1 : index
    %c0_28 = arith.constant 0 : index
    %26 = vector.load %arg8[%c1_27, %c0_28] : memref<9x512xf32, #tpu.memory_space<vmem>>, vector<1x512xf32>
    %27 = vector.broadcast %26 : vector<1x512xf32> to vector<4x512xf32>
    %28 = arith.mulf %25, %27 : vector<4x512xf32>
    %c4 = arith.constant 4 : index
    %c0_29 = arith.constant 0 : index
    %29 = vector.load %arg12[%c4, %c0_29] : memref<36x512xf32, #tpu.memory_space<vmem>>, vector<4x512xf32>
    tpu.vector_store %arg12[%c4, %c0_29], %28 {strides = array<i32>} : memref<36x512xf32, #tpu.memory_space<vmem>>, vector<4x512xf32>,
    %c0_30 = arith.constant 0 : index
    %c113 = arith.constant 113 : index
    %30 = vector.load %arg11[%c0_30, %c113] : memref<4x768xf32, #tpu.memory_space<vmem>>, vector<4x512xf32>
    %c2 = arith.constant 2 : index
    %c0_31 = arith.constant 0 : index
    %31 = vector.load %arg8[%c2, %c0_31] : memref<9x512xf32, #tpu.memory_space<vmem>>, vector<1x512xf32>
    %32 = vector.broadcast %31 : vector<1x512xf32> to vector<4x512xf32>
    %33 = arith.mulf %30, %32 : vector<4x512xf32>
    %c8 = arith.constant 8 : index
    %c0_32 = arith.constant 0 : index
    %34 = vector.load %arg12[%c8, %c0_32] : memref<36x512xf32, #tpu.memory_space<vmem>>, vector<4x512xf32>
    tpu.vector_store %arg12[%c8, %c0_32], %33 {strides = array<i32>} : memref<36x512xf32, #tpu.memory_space<vmem>>, vector<4x512xf32>,
    %c0_33 = arith.constant 0 : index
    %c127 = arith.constant 127 : index
    %35 = vector.load %arg11[%c0_33, %c127] : memref<4x768xf32, #tpu.memory_space<vmem>>, vector<4x512xf32>
    %c3 = arith.constant 3 : index
    %c0_34 = arith.constant 0 : index
    %36 = vector.load %arg8[%c3, %c0_34] : memref<9x512xf32, #tpu.memory_space<vmem>>, vector<1x512xf32>
    %37 = vector.broadcast %36 : vector<1x512xf32> to vector<4x512xf32>
    %38 = arith.mulf %35, %37 : vector<4x512xf32>
    %c12 = arith.constant 12 : index
    %c0_35 = arith.constant 0 : index
    %39 = vector.load %arg12[%c12, %c0_35] : memref<36x512xf32, #tpu.memory_space<vmem>>, vector<4x512xf32>
    tpu.vector_store %arg12[%c12, %c0_35], %38 {strides = array<i32>} : memref<36x512xf32, #tpu.memory_space<vmem>>, vector<4x512xf32>,
    %c0_36 = arith.constant 0 : index
    %c129 = arith.constant 129 : index
    %40 = vector.load %arg11[%c0_36, %c129] : memref<4x768xf32, #tpu.memory_space<vmem>>, vector<4x512xf32>
    %c5 = arith.constant 5 : index
    %c0_37 = arith.constant 0 : index
    %41 = vector.load %arg8[%c5, %c0_37] : memref<9x512xf32, #tpu.memory_space<vmem>>, vector<1x512xf32>
    %42 = vector.broadcast %41 : vector<1x512xf32> to vector<4x512xf32>
    %43 = arith.mulf %40, %42 : vector<4x512xf32>
    %c20 = arith.constant 20 : index
    %c0_38 = arith.constant 0 : index
    %44 = vector.load %arg12[%c20, %c0_38] : memref<36x512xf32, #tpu.memory_space<vmem>>, vector<4x512xf32>
    tpu.vector_store %arg12[%c20, %c0_38], %43 {strides = array<i32>} : memref<36x512xf32, #tpu.memory_space<vmem>>, vector<4x512xf32>,
    %c0_39 = arith.constant 0 : index
    %c143 = arith.constant 143 : index
    %45 = vector.load %arg11[%c0_39, %c143] : memref<4x768xf32, #tpu.memory_space<vmem>>, vector<4x512xf32>
    %c6 = arith.constant 6 : index
    %c0_40 = arith.constant 0 : index
    %46 = vector.load %arg8[%c6, %c0_40] : memref<9x512xf32, #tpu.memory_space<vmem>>, vector<1x512xf32>
    %47 = vector.broadcast %46 : vector<1x512xf32> to vector<4x512xf32>
    %48 = arith.mulf %45, %47 : vector<4x512xf32>
    %c24 = arith.constant 24 : index
    %c0_41 = arith.constant 0 : index
    %49 = vector.load %arg12[%c24, %c0_41] : memref<36x512xf32, #tpu.memory_space<vmem>>, vector<4x512xf32>
    tpu.vector_store %arg12[%c24, %c0_41], %48 {strides = array<i32>} : memref<36x512xf32, #tpu.memory_space<vmem>>, vector<4x512xf32>,
    %c0_42 = arith.constant 0 : index
    %c144 = arith.constant 144 : index
    %50 = vector.load %arg11[%c0_42, %c144] : memref<4x768xf32, #tpu.memory_space<vmem>>, vector<4x512xf32>
    %c7 = arith.constant 7 : index
    %c0_43 = arith.constant 0 : index
    %51 = vector.load %arg8[%c7, %c0_43] : memref<9x512xf32, #tpu.memory_space<vmem>>, vector<1x512xf32>
    %52 = vector.broadcast %51 : vector<1x512xf32> to vector<4x512xf32>
    %53 = arith.mulf %50, %52 : vector<4x512xf32>
    %c28 = arith.constant 28 : index
    %c0_44 = arith.constant 0 : index
    %54 = vector.load %arg12[%c28, %c0_44] : memref<36x512xf32, #tpu.memory_space<vmem>>, vector<4x512xf32>
    tpu.vector_store %arg12[%c28, %c0_44], %53 {strides = array<i32>} : memref<36x512xf32, #tpu.memory_space<vmem>>, vector<4x512xf32>,
    %c0_45 = arith.constant 0 : index
    %c145 = arith.constant 145 : index
    %55 = vector.load %arg11[%c0_45, %c145] : memref<4x768xf32, #tpu.memory_space<vmem>>, vector<4x512xf32>
    %c8_46 = arith.constant 8 : index
    %c0_47 = arith.constant 0 : index
    %56 = vector.load %arg8[%c8_46, %c0_47] : memref<9x512xf32, #tpu.memory_space<vmem>>, vector<1x512xf32>
    %57 = vector.broadcast %56 : vector<1x512xf32> to vector<4x512xf32>
    %58 = arith.mulf %55, %57 : vector<4x512xf32>
    %c32 = arith.constant 32 : index
    %c0_48 = arith.constant 0 : index
    %59 = vector.load %arg12[%c32, %c0_48] : memref<36x512xf32, #tpu.memory_space<vmem>>, vector<4x512xf32>
    tpu.vector_store %arg12[%c32, %c0_48], %58 {strides = array<i32>} : memref<36x512xf32, #tpu.memory_space<vmem>>, vector<4x512xf32>,
    %c0_49 = arith.constant 0 : index
    %c0_50 = arith.constant 0 : index
    %60 = vector.load %arg4[%c0_49, %c0_50] : memref<4x36xf32, #tpu.memory_space<vmem>>, vector<4x36xf32>
    %c0_51 = arith.constant 0 : index
    %c0_52 = arith.constant 0 : index
    %61 = vector.load %arg12[%c0_51, %c0_52] : memref<36x512xf32, #tpu.memory_space<vmem>>, vector<36x512xf32>
    %cst_53 = arith.constant dense<0.000000e+00> : vector<4x512xf32>
    %62 = tpu.matmul %60, %61, %cst_53 {dimension_numbers = #tpu.dot_dimension_numbers<[1], [0], [0], [1], [0, 0, 1, 1], [], []>, precision = #tpu.contract_precision<fp32>} : vector<4x36xf32>, vector<36x512xf32>, vector<4x512xf32> -> vector<4x512xf32>
    %c0_54 = arith.constant 0 : index
    %c0_55 = arith.constant 0 : index
    %63 = vector.load %arg5[%c0_54, %c0_55] : memref<4x1xf32, #tpu.memory_space<vmem>>, vector<4x1xf32>
    %64 = vector.broadcast %63 : vector<4x1xf32> to vector<4x512xf32>
    %65 = arith.addf %62, %64 : vector<4x512xf32>
    %cst_56 = arith.constant 0.000000e+00 : f32
    %66 = vector.broadcast %cst_56 : f32 to vector<4x512xf32>
    %67 = arith.maximumf %65, %66 : vector<4x512xf32>
    %c0_57 = arith.constant 0 : index
    %c0_58 = arith.constant 0 : index
    %68 = vector.load %arg13[%c0_57, %c0_58] : memref<8x512xf32, #tpu.memory_space<vmem>>, vector<4x512xf32>
    tpu.vector_store %arg13[%c0_57, %c0_58], %67 {strides = array<i32>} : memref<8x512xf32, #tpu.memory_space<vmem>>, vector<4x512xf32>,
    %c4_59 = arith.constant 4 : index
    %c0_60 = arith.constant 0 : index
    %69 = vector.load %arg13[%c4_59, %c0_60] : memref<8x512xf32, #tpu.memory_space<vmem>>, vector<4x512xf32>
    tpu.vector_store %arg13[%c4_59, %c0_60], %6 {strides = array<i32>} : memref<8x512xf32, #tpu.memory_space<vmem>>, vector<4x512xf32>,
    %c0_61 = arith.constant 0 : index
    %c0_62 = arith.constant 0 : index
    %70 = vector.load %arg6[%c0_61, %c0_62] : memref<16x8xf32, #tpu.memory_space<vmem>>, vector<16x8xf32>
    %c0_63 = arith.constant 0 : index
    %c0_64 = arith.constant 0 : index
    %71 = vector.load %arg13[%c0_63, %c0_64] : memref<8x512xf32, #tpu.memory_space<vmem>>, vector<8x512xf32>
    %cst_65 = arith.constant dense<0.000000e+00> : vector<16x512xf32>
    %72 = tpu.matmul %70, %71, %cst_65 {dimension_numbers = #tpu.dot_dimension_numbers<[1], [0], [0], [1], [0, 0, 1, 1], [], []>, precision = #tpu.contract_precision<fp32>} : vector<16x8xf32>, vector<8x512xf32>, vector<16x512xf32> -> vector<16x512xf32>
    %c0_66 = arith.constant 0 : index
    %c0_67 = arith.constant 0 : index
    %73 = vector.load %arg7[%c0_66, %c0_67] : memref<16x1xf32, #tpu.memory_space<vmem>>, vector<16x1xf32>
    %74 = vector.broadcast %73 : vector<16x1xf32> to vector<16x512xf32>
    %75 = arith.addf %72, %74 : vector<16x512xf32>
    %cst_68 = arith.constant 0.000000e+00 : f32
    %76 = vector.broadcast %cst_68 : f32 to vector<16x512xf32>
    %77 = arith.maximumf %75, %76 : vector<16x512xf32>
    %78 = vector.extract_strided_slice %77 {offsets = [0, 0], sizes = [16, 256], strides = [1, 1]} : vector<16x512xf32> to vector<16x256xf32>
    %c0_69 = arith.constant 0 : index
    %c0_70 = arith.constant 0 : index
    %c0_71 = arith.constant 0 : index
    %79 = vector.load %arg9[%c0_69, %c0_70, %c0_71] : memref<2x16x256xf32, #tpu.memory_space<vmem>>, vector<1x16x256xf32>
    %80 = vector.shape_cast %79 : vector<1x16x256xf32> to vector<16x256xf32>
    %81 = vector.shape_cast %78 : vector<16x256xf32> to vector<1x16x256xf32>
    tpu.vector_store %arg9[%c0_69, %c0_70, %c0_71], %81 {strides = array<i32>} : memref<2x16x256xf32, #tpu.memory_space<vmem>>, vector<1x16x256xf32>,
    %82 = vector.extract_strided_slice %77 {offsets = [0, 256], sizes = [16, 256], strides = [1, 1]} : vector<16x512xf32> to vector<16x256xf32>
    %c1_72 = arith.constant 1 : index
    %c0_73 = arith.constant 0 : index
    %c0_74 = arith.constant 0 : index
    %83 = vector.load %arg9[%c1_72, %c0_73, %c0_74] : memref<2x16x256xf32, #tpu.memory_space<vmem>>, vector<1x16x256xf32>
    %84 = vector.shape_cast %83 : vector<1x16x256xf32> to vector<16x256xf32>
    %85 = vector.shape_cast %82 : vector<16x256xf32> to vector<1x16x256xf32>
    tpu.vector_store %arg9[%c1_72, %c0_73, %c0_74], %85 {strides = array<i32>} : memref<2x16x256xf32, #tpu.memory_space<vmem>>, vector<1x16x256xf32>,
    return
  }
  func.func @transform_0(%arg0: i32) -> (i32, i32, i32) {
    %c0_i32 = arith.constant 0 : i32
    %c0_i32_0 = arith.constant 0 : i32
    %c0_i32_1 = arith.constant 0 : i32
    %c0_i32_2 = arith.constant 0 : i32
    return %c0_i32, %c0_i32_0, %c0_i32_1 : i32, i32, i32
  }
  func.func @transform_1(%arg0: i32) -> (i32, i32) {
    %c0_i32 = arith.constant 0 : i32
    %c0_i32_0 = arith.constant 0 : i32
    %c0_i32_1 = arith.constant 0 : i32
    return %c0_i32, %c0_i32_0 : i32, i32
  }
  func.func @transform_2(%arg0: i32) -> (i32, i32) {
    %c0_i32 = arith.constant 0 : i32
    %c0_i32_0 = arith.constant 0 : i32
    %c0_i32_1 = arith.constant 0 : i32
    return %c0_i32, %c0_i32_0 : i32, i32
  }
  func.func @transform_3(%arg0: i32) -> (i32, i32) {
    %c0_i32 = arith.constant 0 : i32
    %c0_i32_0 = arith.constant 0 : i32
    %c0_i32_1 = arith.constant 0 : i32
    return %c0_i32, %c0_i32_0 : i32, i32
  }
  func.func @transform_4(%arg0: i32) -> (i32, i32) {
    %c0_i32 = arith.constant 0 : i32
    %c0_i32_0 = arith.constant 0 : i32
    %c0_i32_1 = arith.constant 0 : i32
    return %c0_i32, %c0_i32_0 : i32, i32
  }
  func.func @transform_5(%arg0: i32) -> (i32, i32) {
    %c0_i32 = arith.constant 0 : i32
    %c0_i32_0 = arith.constant 0 : i32
    %c0_i32_1 = arith.constant 0 : i32
    return %c0_i32, %c0_i32_0 : i32, i32
  }
  func.func @transform_6(%arg0: i32) -> (i32, i32) {
    %c0_i32 = arith.constant 0 : i32
    %c0_i32_0 = arith.constant 0 : i32
    %c0_i32_1 = arith.constant 0 : i32
    return %c0_i32, %c0_i32_0 : i32, i32
  }
  func.func @transform_7(%arg0: i32) -> (i32, i32) {
    %c0_i32 = arith.constant 0 : i32
    %c0_i32_0 = arith.constant 0 : i32
    %c0_i32_1 = arith.constant 0 : i32
    return %c0_i32, %c0_i32_0 : i32, i32
  }
  func.func @transform_8(%arg0: i32) -> (i32, i32, i32) {
    %c0_i32 = arith.constant 0 : i32
    %c0_i32_0 = arith.constant 0 : i32
    %c0_i32_1 = arith.constant 0 : i32
    %c0_i32_2 = arith.constant 0 : i32
    return %c0_i32, %c0_i32_0, %c0_i32_1 : i32, i32, i32
  }
}

</mosaic_0001>

<llo_original>
// kernel: bottleneck_forward.1
$region0: #{bottleneck_forward.1}
  #allocation0 [shape = 'u32[]', space=smem, size = 0x4, offset = 0x4, fixed_abs, tag = 'smem constant byte address 0x4 - core index']
  #allocation1 [shape = 'u32[72,128]{1,0:T(1,128)}', space=vmem, size = 0x9000, scoped, tag = 'internal scratch']
  #allocation2 [shape = 'f32[4,512]{1,0:T(4,128)}', space=vmem, size = 0x2000, scoped, tag = 'scratch operand']
  #allocation3 [shape = 'f32[4,768]{1,0:T(4,128)}', space=vmem, size = 0x3000, scoped, tag = 'scratch operand']
  #allocation4 [shape = 'f32[36,512]{1,0:T(8,128)}', space=vmem, size = 0x14000, scoped, tag = 'scratch operand']
  #allocation5 [shape = 'f32[8,512]{1,0:T(8,128)}', space=vmem, size = 0x4000, scoped, tag = 'scratch operand']
  %s0 = inlined_call_operand.vmem [shape: f32[2,4,256], index: 0, kind: input, shape index: {}]
  %s1 = inlined_call_operand.vmem [shape: f32[4,4], index: 1, kind: input, shape index: {}]
  %s2 = inlined_call_operand.vmem [shape: f32[4,1], index: 2, kind: input, shape index: {}]
  %s3 = inlined_call_operand.vmem [shape: f32[4,36], index: 3, kind: input, shape index: {}]
  %s4 = inlined_call_operand.vmem [shape: f32[4,1], index: 4, kind: input, shape index: {}]
  %s5 = inlined_call_operand.vmem [shape: f32[16,8], index: 5, kind: input, shape index: {}]
  %s6 = inlined_call_operand.vmem [shape: f32[16,1], index: 6, kind: input, shape index: {}]
  %s7 = inlined_call_operand.vmem [shape: f32[9,512], index: 7, kind: input, shape index: {}]
  %s8 = inlined_call_operand.vmem [shape: f32[2,16,256], index: 8, kind: output, shape index: {}]
  %s9 = sld [smem:[#allocation0]]
  $region42: #{bottleneck_forward.1} parent=0
    _
  %s11 = ssub.s32 1, %s9
  %s12 = scalar_select 0, %s11, %s9
  // Predicated region
  $region2: #{bottleneck_forward.1} parent=0 // pred_check
    _
  $region3: #{bottleneck_forward.1} parent=0 // pred_check_branch
    %14 = sbr.rel (0) target = $region5
  $region4: #{bottleneck_forward.1} parent=0 // pred_region
    _
  $region5: #{bottleneck_forward.1} parent=0 // pred_fallthru
    _
  // Predicated region
  $region6: #{bottleneck_forward.1} parent=0 // pred_check
    _
  $region7: #{bottleneck_forward.1} parent=0 // pred_check_branch
    %16 = sbr.rel (0) target = $region9
  $region8: #{bottleneck_forward.1} parent=0 // pred_region
    _
  $region9: #{bottleneck_forward.1} parent=0 // pred_fallthru
    _
  // Predicated region
  $region10: #{bottleneck_forward.1} parent=0 // pred_check
    _
  $region11: #{bottleneck_forward.1} parent=0 // pred_check_branch
    %18 = sbr.rel (0) target = $region13
  $region12: #{bottleneck_forward.1} parent=0 // pred_region
    _
  $region13: #{bottleneck_forward.1} parent=0 // pred_fallthru
    _
  // Predicated region
  $region14: #{bottleneck_forward.1} parent=0 // pred_check
    _
  $region15: #{bottleneck_forward.1} parent=0 // pred_check_branch
    %20 = sbr.rel (0) target = $region17
  $region16: #{bottleneck_forward.1} parent=0 // pred_region
    _
  $region17: #{bottleneck_forward.1} parent=0 // pred_fallthru
    _
  // Predicated region
  $region18: #{bottleneck_forward.1} parent=0 // pred_check
    _
  $region19: #{bottleneck_forward.1} parent=0 // pred_check_branch
    %22 = sbr.rel (0) target = $region21
  $region20: #{bottleneck_forward.1} parent=0 // pred_region
    _
  $region21: #{bottleneck_forward.1} parent=0 // pred_fallthru
    _
  // Predicated region
  $region22: #{bottleneck_forward.1} parent=0 // pred_check
    _
  $region23: #{bottleneck_forward.1} parent=0 // pred_check_branch
    %24 = sbr.rel (0) target = $region25
  $region24: #{bottleneck_forward.1} parent=0 // pred_region
    _
  $region25: #{bottleneck_forward.1} parent=0 // pred_fallthru
    _
  // Predicated region
  $region26: #{bottleneck_forward.1} parent=0 // pred_check
    _
  $region27: #{bottleneck_forward.1} parent=0 // pred_check_branch
    %26 = sbr.rel (0) target = $region29
  $region28: #{bottleneck_forward.1} parent=0 // pred_region
    _
  $region29: #{bottleneck_forward.1} parent=0 // pred_fallthru
    _
  // Predicated region
  $region30: #{bottleneck_forward.1} parent=0 // pred_check
    _
  $region31: #{bottleneck_forward.1} parent=0 // pred_check_branch
    %28 = sbr.rel (0) target = $region33
  $region32: #{bottleneck_forward.1} parent=0 // pred_region
    _
  $region33: #{bottleneck_forward.1} parent=0 // pred_fallthru
    _
  %v29 = vld [vmem:[%s0] sm:$0xff]
  %30 = vst [vmem:[#allocation2] sm:$0xff] %v29
  %s31 = scalar_lea.vmem %s0, 8
  %v32 = vld [vmem:[%s31] sm:$0xff]
  %33 = vst [vmem:[#allocation2 + $0x8] sm:$0xff] %v32
  %v34 = vld [vmem:[#allocation2] sm:$0xff]
  %v35 = vld [vmem:[#allocation2 + $0x8] sm:$0xff]
  %v36 = vld [vmem:[%s1] sm:$0xf]
  %v37 = vld [vmem:[%s2] sm:$0xf]
  %39 = vset.pattern.permute.xlu0 0
  %40 = vperm.xlu0 %39, %v37
  %v41 = vpop.permute.xlu0 %40
  %45 = vst [vmem:[#allocation1] ss:$2 sm:$0xff] %v34
  %s46 = scalar_lea.vmem [#allocation1], 16
  %47 = vst [vmem:[%s46] ss:$2 sm:$0xff] %v35
  %v48 = vld.sshfl [vmem:[#allocation1] sm:$0xff pattern:$0x75316420]
  %v49 = vld.sshfl [vmem:[#allocation1 + $0x8] sm:$0xff pattern:$0x75316420]
  %v50 = vld.sshfl [vmem:[#allocation1 + $0x10] sm:$0xff pattern:$0x75316420]
  %v51 = vld.sshfl [vmem:[#allocation1 + $0x18] sm:$0xff pattern:$0x75316420]
  %vm52 = vcmask 31744
  %v54 = vsel %vm52, %v36, 0
  %vm56 = vcmask 1043456
  %v57 = vsel %vm56, %v48, 0
  %v59 = vsel %vm56, %v49, 0
  %v61 = vsel %vm56, %v50, 0
  %v63 = vsel %vm56, %v51, 0
  %65 = vmatpush.msra.mxu0 0.0
  %66 = vmatpush.msra.mxu0 0.0
  %67 = vmatpush.msra.mxu0 0.0
  %68 = vmatpush.msra.mxu0 0.0
  %69 = vmatpush.msra.mxu0 0.0
  %70 = vmatpush.msra.mxu0 0.0
  %71 = vmatpush.msra.mxu0 0.0
  %72 = vmatpush.msra.mxu0 0.0
  %73 = vmatpush.msra.mxu0 0.0
  %74 = vmatpush.msra.mxu0 0.0
  %75 = vmatpush.msra.mxu0 0.0
  %76 = vmatpush.msra.mxu0 0.0
  %77 = vmatpush.msra.mxu0 0.0
  %78 = vmatpush.msra.mxu0 0.0
  %79 = vmatpush.msra.mxu0 0.0
  %v80 = vand.u32 %v57, 4294901760
  %81 = vmatpush.msra.mxu0 %v80
  %v82 = vand.u32 %v54, 4294901760
  %v83 = vsub.f32 %v54, %v82
  %v84 = vand.u32 %v83, 4294901760
  %v85 = vsub.f32 %v83, %v84
  %v86 = vand.u32 %v85, 4294901760
  %87 = vmatmul.f32.gmra.mxu0 %v86
  %v88 = vpop.f32.mrf.mxu0
  %v89 = vadd.f32 %v41, %v88
  %90 = vdwg.mxu0
  %91 = vmatpush.msra.mxu0 0.0
  %92 = vmatpush.msra.mxu0 0.0
  %93 = vmatpush.msra.mxu0 0.0
  %94 = vmatpush.msra.mxu0 0.0
  %95 = vmatpush.msra.mxu0 0.0
  %96 = vmatpush.msra.mxu0 0.0
  %97 = vmatpush.msra.mxu0 0.0
  %98 = vmatpush.msra.mxu0 0.0
  %99 = vmatpush.msra.mxu0 0.0
  %100 = vmatpush.msra.mxu0 0.0
  %101 = vmatpush.msra.mxu0 0.0
  %102 = vmatpush.msra.mxu0 0.0
  %103 = vmatpush.msra.mxu0 0.0
  %104 = vmatpush.msra.mxu0 0.0
  %105 = vmatpush.msra.mxu0 0.0
  %v106 = vand.u32 %v57, 4294901760
  %v107 = vsub.f32 %v57, %v106
  %v108 = vand.u32 %v107, 4294901760
  %v109 = vsub.f32 %v107, %v108
  %v110 = vand.u32 %v109, 4294901760
  %111 = vmatpush.msra.mxu0 %v110
  %v112 = vand.u32 %v54, 4294901760
  %113 = vmatmul.f32.gmra.mxu0 %v112
  %v114 = vpop.f32.mrf.mxu0
  %v115 = vadd.f32 %v89, %v114
  %116 = vdwg.mxu0
  %117 = vmatpush.msra.mxu0 0.0
  %118 = vmatpush.msra.mxu0 0.0
  %119 = vmatpush.msra.mxu0 0.0
  %120 = vmatpush.msra.mxu0 0.0
  %121 = vmatpush.msra.mxu0 0.0
  %122 = vmatpush.msra.mxu0 0.0
  %123 = vmatpush.msra.mxu0 0.0
  %124 = vmatpush.msra.mxu0 0.0
  %125 = vmatpush.msra.mxu0 0.0
  %126 = vmatpush.msra.mxu0 0.0
  %127 = vmatpush.msra.mxu0 0.0
  %128 = vmatpush.msra.mxu0 0.0
  %129 = vmatpush.msra.mxu0 0.0
  %130 = vmatpush.msra.mxu0 0.0
  %131 = vmatpush.msra.mxu0 0.0
  %v132 = vand.u32 %v57, 4294901760
  %v133 = vsub.f32 %v57, %v132
  %134 = vmatpush.msra.mxu0 %v133
  %v135 = vand.u32 %v54, 4294901760
  %v136 = vsub.f32 %v54, %v135
  %137 = vmatmul.f32.gmra.mxu0 %v136
  %v138 = vpop.f32.mrf.mxu0
  %v139 = vadd.f32 %v115, %v138
  %140 = vdwg.mxu0
  %141 = vmatpush.msra.mxu0 0.0
  %142 = vmatpush.msra.mxu0 0.0
  %143 = vmatpush.msra.mxu0 0.0
  %144 = vmatpush.msra.mxu0 0.0
  %145 = vmatpush.msra.mxu0 0.0
  %146 = vmatpush.msra.mxu0 0.0
  %147 = vmatpush.msra.mxu0 0.0
  %148 = vmatpush.msra.mxu0 0.0
  %149 = vmatpush.msra.mxu0 0.0
  %150 = vmatpush.msra.mxu0 0.0
  %151 = vmatpush.msra.mxu0 0.0
  %152 = vmatpush.msra.mxu0 0.0
  %153 = vmatpush.msra.mxu0 0.0
  %154 = vmatpush.msra.mxu0 0.0
  %155 = vmatpush.msra.mxu0 0.0
  %v156 = vand.u32 %v57, 4294901760
  %157 = vmatpush.msra.mxu0 %v156
  %v158 = vand.u32 %v54, 4294901760
  %v159 = vsub.f32 %v54, %v158
  %v160 = vand.u32 %v159, 4294901760
  %161 = vmatmul.f32.gmra.mxu0 %v160
  %v162 = vpop.f32.mrf.mxu0
  %v163 = vadd.f32 %v139, %v162
  %164 = vdwg.mxu0
  %165 = vmatpush.msra.mxu0 0.0
  %166 = vmatpush.msra.mxu0 0.0
  %167 = vmatpush.msra.mxu0 0.0
  %168 = vmatpush.msra.mxu0 0.0
  %169 = vmatpush.msra.mxu0 0.0
  %170 = vmatpush.msra.mxu0 0.0
  %171 = vmatpush.msra.mxu0 0.0
  %172 = vmatpush.msra.mxu0 0.0
  %173 = vmatpush.msra.mxu0 0.0
  %174 = vmatpush.msra.mxu0 0.0
  %175 = vmatpush.msra.mxu0 0.0
  %176 = vmatpush.msra.mxu0 0.0
  %177 = vmatpush.msra.mxu0 0.0
  %178 = vmatpush.msra.mxu0 0.0
  %179 = vmatpush.msra.mxu0 0.0
  %v180 = vand.u32 %v57, 4294901760
  %v181 = vsub.f32 %v57, %v180
  %v182 = vand.u32 %v181, 4294901760
  %183 = vmatpush.msra.mxu0 %v182
  %v184 = vand.u32 %v54, 4294901760
  %185 = vmatmul.f32.gmra.mxu0 %v184
  %v186 = vpop.f32.mrf.mxu0
  %v187 = vadd.f32 %v163, %v186
  %188 = vdwg.mxu0
  %189 = vmatpush.msra.mxu0 0.0
  %190 = vmatpush.msra.mxu0 0.0
  %191 = vmatpush.msra.mxu0 0.0
  %192 = vmatpush.msra.mxu0 0.0
  %193 = vmatpush.msra.mxu0 0.0
  %194 = vmatpush.msra.mxu0 0.0
  %195 = vmatpush.msra.mxu0 0.0
  %196 = vmatpush.msra.mxu0 0.0
  %197 = vmatpush.msra.mxu0 0.0
  %198 = vmatpush.msra.mxu0 0.0
  %199 = vmatpush.msra.mxu0 0.0
  %200 = vmatpush.msra.mxu0 0.0
  %201 = vmatpush.msra.mxu0 0.0
  %202 = vmatpush.msra.mxu0 0.0
  %203 = vmatpush.msra.mxu0 0.0
  %v204 = vand.u32 %v57, 4294901760
  %205 = vmatpush.msra.mxu0 %v204
  %v206 = vand.u32 %v54, 4294901760
  %207 = vmatmul.f32.gmra.mxu0 %v206
  %v208 = vpop.f32.mrf.mxu0
  %v209 = vadd.f32 %v187, %v208
  %210 = vdwg.mxu0
  %211 = vmatpush.msra.mxu0 0.0
  %212 = vmatpush.msra.mxu0 0.0
  %213 = vmatpush.msra.mxu0 0.0
  %214 = vmatpush.msra.mxu0 0.0
  %215 = vmatpush.msra.mxu0 0.0
  %216 = vmatpush.msra.mxu0 0.0
  %217 = vmatpush.msra.mxu0 0.0
  %218 = vmatpush.msra.mxu0 0.0
  %219 = vmatpush.msra.mxu0 0.0
  %220 = vmatpush.msra.mxu0 0.0
  %221 = vmatpush.msra.mxu0 0.0
  %222 = vmatpush.msra.mxu0 0.0
  %223 = vmatpush.msra.mxu0 0.0
  %224 = vmatpush.msra.mxu0 0.0
  %225 = vmatpush.msra.mxu0 0.0
  %v226 = vand.u32 %v59, 4294901760
  %227 = vmatpush.msra.mxu0 %v226
  %v228 = vand.u32 %v54, 4294901760
  %v229 = vsub.f32 %v54, %v228
  %v230 = vand.u32 %v229, 4294901760
  %v231 = vsub.f32 %v229, %v230
  %v232 = vand.u32 %v231, 4294901760
  %233 = vmatmul.f32.gmra.mxu0 %v232
  %v234 = vpop.f32.mrf.mxu0
  %v235 = vadd.f32 %v41, %v234
  %236 = vdwg.mxu0
  %237 = vmatpush.msra.mxu0 0.0
  %238 = vmatpush.msra.mxu0 0.0
  %239 = vmatpush.msra.mxu0 0.0
  %240 = vmatpush.msra.mxu0 0.0
  %241 = vmatpush.msra.mxu0 0.0
  %242 = vmatpush.msra.mxu0 0.0
  %243 = vmatpush.msra.mxu0 0.0
  %244 = vmatpush.msra.mxu0 0.0
  %245 = vmatpush.msra.mxu0 0.0
  %246 = vmatpush.msra.mxu0 0.0
  %247 = vmatpush.msra.mxu0 0.0
  %248 = vmatpush.msra.mxu0 0.0
  %249 = vmatpush.msra.mxu0 0.0
  %250 = vmatpush.msra.mxu0 0.0
  %251 = vmatpush.msra.mxu0 0.0
  %v252 = vand.u32 %v59, 4294901760
  %v253 = vsub.f32 %v59, %v252
  %v254 = vand.u32 %v253, 4294901760
  %v255 = vsub.f32 %v253, %v254
  %v256 = vand.u32 %v255, 4294901760
  %257 = vmatpush.msra.mxu0 %v256
  %v258 = vand.u32 %v54, 4294901760
  %259 = vmatmul.f32.gmra.mxu0 %v258
  %v260 = vpop.f32.mrf.mxu0
  %v261 = vadd.f32 %v235, %v260
  %262 = vdwg.mxu0
  %263 = vmatpush.msra.mxu0 0.0
  %264 = vmatpush.msra.mxu0 0.0
  %265 = vmatpush.msra.mxu0 0.0
  %266 = vmatpush.msra.mxu0 0.0
  %267 = vmatpush.msra.mxu0 0.0
  %268 = vmatpush.msra.mxu0 0.0
  %269 = vmatpush.msra.mxu0 0.0
  %270 = vmatpush.msra.mxu0 0.0
  %271 = vmatpush.msra.mxu0 0.0
  %272 = vmatpush.msra.mxu0 0.0
  %273 = vmatpush.msra.mxu0 0.0
  %274 = vmatpush.msra.mxu0 0.0
  %275 = vmatpush.msra.mxu0 0.0
  %276 = vmatpush.msra.mxu0 0.0
  %277 = vmatpush.msra.mxu0 0.0
  %v278 = vand.u32 %v59, 4294901760
  %v279 = vsub.f32 %v59, %v278
  %280 = vmatpush.msra.mxu0 %v279
  %v281 = vand.u32 %v54, 4294901760
  %v282 = vsub.f32 %v54, %v281
  %283 = vmatmul.f32.gmra.mxu0 %v282
  %v284 = vpop.f32.mrf.mxu0
  %v285 = vadd.f32 %v261, %v284
  %286 = vdwg.mxu0
  %287 = vmatpush.msra.mxu0 0.0
  %288 = vmatpush.msra.mxu0 0.0
  %289 = vmatpush.msra.mxu0 0.0
  %290 = vmatpush.msra.mxu0 0.0
  %291 = vmatpush.msra.mxu0 0.0
  %292 = vmatpush.msra.mxu0 0.0
  %293 = vmatpush.msra.mxu0 0.0
  %294 = vmatpush.msra.mxu0 0.0
  %295 = vmatpush.msra.mxu0 0.0
  %296 = vmatpush.msra.mxu0 0.0
  %297 = vmatpush.msra.mxu0 0.0
  %298 = vmatpush.msra.mxu0 0.0
  %299 = vmatpush.msra.mxu0 0.0
  %300 = vmatpush.msra.mxu0 0.0
  %301 = vmatpush.msra.mxu0 0.0
  %v302 = vand.u32 %v59, 4294901760
  %303 = vmatpush.msra.mxu0 %v302
  %v304 = vand.u32 %v54, 4294901760
  %v305 = vsub.f32 %v54, %v304
  %v306 = vand.u32 %v305, 4294901760
  %307 = vmatmul.f32.gmra.mxu0 %v306
  %v308 = vpop.f32.mrf.mxu0
  %v309 = vadd.f32 %v285, %v308
  %310 = vdwg.mxu0
  %311 = vmatpush.msra.mxu0 0.0
  %312 = vmatpush.msra.mxu0 0.0
  %313 = vmatpush.msra.mxu0 0.0
  %314 = vmatpush.msra.mxu0 0.0
  %315 = vmatpush.msra.mxu0 0.0
  %316 = vmatpush.msra.mxu0 0.0
  %317 = vmatpush.msra.mxu0 0.0
  %318 = vmatpush.msra.mxu0 0.0
  %319 = vmatpush.msra.mxu0 0.0
  %320 = vmatpush.msra.mxu0 0.0
  %321 = vmatpush.msra.mxu0 0.0
  %322 = vmatpush.msra.mxu0 0.0
  %323 = vmatpush.msra.mxu0 0.0
  %324 = vmatpush.msra.mxu0 0.0
  %325 = vmatpush.msra.mxu0 0.0
  %v326 = vand.u32 %v59, 4294901760
  %v327 = vsub.f32 %v59, %v326
  %v328 = vand.u32 %v327, 4294901760
  %329 = vmatpush.msra.mxu0 %v328
  %v330 = vand.u32 %v54, 4294901760
  %331 = vmatmul.f32.gmra.mxu0 %v330
  %v332 = vpop.f32.mrf.mxu0
  %v333 = vadd.f32 %v309, %v332
  %334 = vdwg.mxu0
  %335 = vmatpush.msra.mxu0 0.0
  %336 = vmatpush.msra.mxu0 0.0
  %337 = vmatpush.msra.mxu0 0.0
  %338 = vmatpush.msra.mxu0 0.0
  %339 = vmatpush.msra.mxu0 0.0
  %340 = vmatpush.msra.mxu0 0.0
  %341 = vmatpush.msra.mxu0 0.0
  %342 = vmatpush.msra.mxu0 0.0
  %343 = vmatpush.msra.mxu0 0.0
  %344 = vmatpush.msra.mxu0 0.0
  %345 = vmatpush.msra.mxu0 0.0
  %346 = vmatpush.msra.mxu0 0.0
  %347 = vmatpush.msra.mxu0 0.0
  %348 = vmatpush.msra.mxu0 0.0
  %349 = vmatpush.msra.mxu0 0.0
  %v350 = vand.u32 %v59, 4294901760
  %351 = vmatpush.msra.mxu0 %v350
  %v352 = vand.u32 %v54, 4294901760
  %353 = vmatmul.f32.gmra.mxu0 %v352
  %v354 = vpop.f32.mrf.mxu0
  %v355 = vadd.f32 %v333, %v354
  %356 = vdwg.mxu0
  %357 = vmatpush.msra.mxu0 0.0
  %358 = vmatpush.msra.mxu0 0.0
  %359 = vmatpush.msra.mxu0 0.0
  %360 = vmatpush.msra.mxu0 0.0
  %361 = vmatpush.msra.mxu0 0.0
  %362 = vmatpush.msra.mxu0 0.0
  %363 = vmatpush.msra.mxu0 0.0
  %364 = vmatpush.msra.mxu0 0.0
  %365 = vmatpush.msra.mxu0 0.0
  %366 = vmatpush.msra.mxu0 0.0
  %367 = vmatpush.msra.mxu0 0.0
  %368 = vmatpush.msra.mxu0 0.0
  %369 = vmatpush.msra.mxu0 0.0
  %370 = vmatpush.msra.mxu0 0.0
  %371 = vmatpush.msra.mxu0 0.0
  %v372 = vand.u32 %v61, 4294901760
  %373 = vmatpush.msra.mxu0 %v372
  %v374 = vand.u32 %v54, 4294901760
  %v375 = vsub.f32 %v54, %v374
  %v376 = vand.u32 %v375, 4294901760
  %v377 = vsub.f32 %v375, %v376
  %v378 = vand.u32 %v377, 4294901760
  %379 = vmatmul.f32.gmra.mxu0 %v378
  %v380 = vpop.f32.mrf.mxu0
  %v381 = vadd.f32 %v41, %v380
  %382 = vdwg.mxu0
  %383 = vmatpush.msra.mxu0 0.0
  %384 = vmatpush.msra.mxu0 0.0
  %385 = vmatpush.msra.mxu0 0.0
  %386 = vmatpush.msra.mxu0 0.0
  %387 = vmatpush.msra.mxu0 0.0
  %388 = vmatpush.msra.mxu0 0.0
  %389 = vmatpush.msra.mxu0 0.0
  %390 = vmatpush.msra.mxu0 0.0
  %391 = vmatpush.msra.mxu0 0.0
  %392 = vmatpush.msra.mxu0 0.0
  %393 = vmatpush.msra.mxu0 0.0
  %394 = vmatpush.msra.mxu0 0.0
  %395 = vmatpush.msra.mxu0 0.0
  %396 = vmatpush.msra.mxu0 0.0
  %397 = vmatpush.msra.mxu0 0.0
  %v398 = vand.u32 %v61, 4294901760
  %v399 = vsub.f32 %v61, %v398
  %v400 = vand.u32 %v399, 4294901760
  %v401 = vsub.f32 %v399, %v400
  %v402 = vand.u32 %v401, 4294901760
  %403 = vmatpush.msra.mxu0 %v402
  %v404 = vand.u32 %v54, 4294901760
  %405 = vmatmul.f32.gmra.mxu0 %v404
  %v406 = vpop.f32.mrf.mxu0
  %v407 = vadd.f32 %v381, %v406
  %408 = vdwg.mxu0
  %409 = vmatpush.msra.mxu0 0.0
  %410 = vmatpush.msra.mxu0 0.0
  %411 = vmatpush.msra.mxu0 0.0
  %412 = vmatpush.msra.mxu0 0.0
  %413 = vmatpush.msra.mxu0 0.0
  %414 = vmatpush.msra.mxu0 0.0
  %415 = vmatpush.msra.mxu0 0.0
  %416 = vmatpush.msra.mxu0 0.0
  %417 = vmatpush.msra.mxu0 0.0
  %418 = vmatpush.msra.mxu0 0.0
  %419 = vmatpush.msra.mxu0 0.0
  %420 = vmatpush.msra.mxu0 0.0
  %421 = vmatpush.msra.mxu0 0.0
  %422 = vmatpush.msra.mxu0 0.0
  %423 = vmatpush.msra.mxu0 0.0
  %v424 = vand.u32 %v61, 4294901760
  %v425 = vsub.f32 %v61, %v424
  %426 = vmatpush.msra.mxu0 %v425
  %v427 = vand.u32 %v54, 4294901760
  %v428 = vsub.f32 %v54, %v427
  %429 = vmatmul.f32.gmra.mxu0 %v428
  %v430 = vpop.f32.mrf.mxu0
  %v431 = vadd.f32 %v407, %v430
  %432 = vdwg.mxu0
  %433 = vmatpush.msra.mxu0 0.0
  %434 = vmatpush.msra.mxu0 0.0
  %435 = vmatpush.msra.mxu0 0.0
  %436 = vmatpush.msra.mxu0 0.0
  %437 = vmatpush.msra.mxu0 0.0
  %438 = vmatpush.msra.mxu0 0.0
  %439 = vmatpush.msra.mxu0 0.0
  %440 = vmatpush.msra.mxu0 0.0
  %441 = vmatpush.msra.mxu0 0.0
  %442 = vmatpush.msra.mxu0 0.0
  %443 = vmatpush.msra.mxu0 0.0
  %444 = vmatpush.msra.mxu0 0.0
  %445 = vmatpush.msra.mxu0 0.0
  %446 = vmatpush.msra.mxu0 0.0
  %447 = vmatpush.msra.mxu0 0.0
  %v448 = vand.u32 %v61, 4294901760
  %449 = vmatpush.msra.mxu0 %v448
  %v450 = vand.u32 %v54, 4294901760
  %v451 = vsub.f32 %v54, %v450
  %v452 = vand.u32 %v451, 4294901760
  %453 = vmatmul.f32.gmra.mxu0 %v452
  %v454 = vpop.f32.mrf.mxu0
  %v455 = vadd.f32 %v431, %v454
  %456 = vdwg.mxu0
  %457 = vmatpush.msra.mxu0 0.0
  %458 = vmatpush.msra.mxu0 0.0
  %459 = vmatpush.msra.mxu0 0.0
  %460 = vmatpush.msra.mxu0 0.0
  %461 = vmatpush.msra.mxu0 0.0
  %462 = vmatpush.msra.mxu0 0.0
  %463 = vmatpush.msra.mxu0 0.0
  %464 = vmatpush.msra.mxu0 0.0
  %465 = vmatpush.msra.mxu0 0.0
  %466 = vmatpush.msra.mxu0 0.0
  %467 = vmatpush.msra.mxu0 0.0
  %468 = vmatpush.msra.mxu0 0.0
  %469 = vmatpush.msra.mxu0 0.0
  %470 = vmatpush.msra.mxu0 0.0
  %471 = vmatpush.msra.mxu0 0.0
  %v472 = vand.u32 %v61, 4294901760
  %v473 = vsub.f32 %v61, %v472
  %v474 = vand.u32 %v473, 4294901760
  %475 = vmatpush.msra.mxu0 %v474
  %v476 = vand.u32 %v54, 4294901760
  %477 = vmatmul.f32.gmra.mxu0 %v476
  %v478 = vpop.f32.mrf.mxu0
  %v479 = vadd.f32 %v455, %v478
  %480 = vdwg.mxu0
  %481 = vmatpush.msra.mxu0 0.0
  %482 = vmatpush.msra.mxu0 0.0
  %483 = vmatpush.msra.mxu0 0.0
  %484 = vmatpush.msra.mxu0 0.0
  %485 = vmatpush.msra.mxu0 0.0
  %486 = vmatpush.msra.mxu0 0.0
  %487 = vmatpush.msra.mxu0 0.0
  %488 = vmatpush.msra.mxu0 0.0
  %489 = vmatpush.msra.mxu0 0.0
  %490 = vmatpush.msra.mxu0 0.0
  %491 = vmatpush.msra.mxu0 0.0
  %492 = vmatpush.msra.mxu0 0.0
  %493 = vmatpush.msra.mxu0 0.0
  %494 = vmatpush.msra.mxu0 0.0
  %495 = vmatpush.msra.mxu0 0.0
  %v496 = vand.u32 %v61, 4294901760
  %497 = vmatpush.msra.mxu0 %v496
  %v498 = vand.u32 %v54, 4294901760
  %499 = vmatmul.f32.gmra.mxu0 %v498
  %v500 = vpop.f32.mrf.mxu0
  %v501 = vadd.f32 %v479, %v500
  %502 = vdwg.mxu0
  %503 = vmatpush.msra.mxu0 0.0
  %504 = vmatpush.msra.mxu0 0.0
  %505 = vmatpush.msra.mxu0 0.0
  %506 = vmatpush.msra.mxu0 0.0
  %507 = vmatpush.msra.mxu0 0.0
  %508 = vmatpush.msra.mxu0 0.0
  %509 = vmatpush.msra.mxu0 0.0
  %510 = vmatpush.msra.mxu0 0.0
  %511 = vmatpush.msra.mxu0 0.0
  %512 = vmatpush.msra.mxu0 0.0
  %513 = vmatpush.msra.mxu0 0.0
  %514 = vmatpush.msra.mxu0 0.0
  %515 = vmatpush.msra.mxu0 0.0
  %516 = vmatpush.msra.mxu0 0.0
  %517 = vmatpush.msra.mxu0 0.0
  %v518 = vand.u32 %v63, 4294901760
  %519 = vmatpush.msra.mxu0 %v518
  %v520 = vand.u32 %v54, 4294901760
  %v521 = vsub.f32 %v54, %v520
  %v522 = vand.u32 %v521, 4294901760
  %v523 = vsub.f32 %v521, %v522
  %v524 = vand.u32 %v523, 4294901760
  %525 = vmatmul.f32.gmra.mxu0 %v524
  %v526 = vpop.f32.mrf.mxu0
  %v527 = vadd.f32 %v41, %v526
  %528 = vdwg.mxu0
  %529 = vmatpush.msra.mxu0 0.0
  %530 = vmatpush.msra.mxu0 0.0
  %531 = vmatpush.msra.mxu0 0.0
  %532 = vmatpush.msra.mxu0 0.0
  %533 = vmatpush.msra.mxu0 0.0
  %534 = vmatpush.msra.mxu0 0.0
  %535 = vmatpush.msra.mxu0 0.0
  %536 = vmatpush.msra.mxu0 0.0
  %537 = vmatpush.msra.mxu0 0.0
  %538 = vmatpush.msra.mxu0 0.0
  %539 = vmatpush.msra.mxu0 0.0
  %540 = vmatpush.msra.mxu0 0.0
  %541 = vmatpush.msra.mxu0 0.0
  %542 = vmatpush.msra.mxu0 0.0
  %543 = vmatpush.msra.mxu0 0.0
  %v544 = vand.u32 %v63, 4294901760
  %v545 = vsub.f32 %v63, %v544
  %v546 = vand.u32 %v545, 4294901760
  %v547 = vsub.f32 %v545, %v546
  %v548 = vand.u32 %v547, 4294901760
  %549 = vmatpush.msra.mxu0 %v548
  %v550 = vand.u32 %v54, 4294901760
  %551 = vmatmul.f32.gmra.mxu0 %v550
  %v552 = vpop.f32.mrf.mxu0
  %v553 = vadd.f32 %v527, %v552
  %554 = vdwg.mxu0
  %555 = vmatpush.msra.mxu0 0.0
  %556 = vmatpush.msra.mxu0 0.0
  %557 = vmatpush.msra.mxu0 0.0
  %558 = vmatpush.msra.mxu0 0.0
  %559 = vmatpush.msra.mxu0 0.0
  %560 = vmatpush.msra.mxu0 0.0
  %561 = vmatpush.msra.mxu0 0.0
  %562 = vmatpush.msra.mxu0 0.0
  %563 = vmatpush.msra.mxu0 0.0
  %564 = vmatpush.msra.mxu0 0.0
  %565 = vmatpush.msra.mxu0 0.0
  %566 = vmatpush.msra.mxu0 0.0
  %567 = vmatpush.msra.mxu0 0.0
  %568 = vmatpush.msra.mxu0 0.0
  %569 = vmatpush.msra.mxu0 0.0
  %v570 = vand.u32 %v63, 4294901760
  %v571 = vsub.f32 %v63, %v570
  %572 = vmatpush.msra.mxu0 %v571
  %v573 = vand.u32 %v54, 4294901760
  %v574 = vsub.f32 %v54, %v573
  %575 = vmatmul.f32.gmra.mxu0 %v574
  %v576 = vpop.f32.mrf.mxu0
  %v577 = vadd.f32 %v553, %v576
  %578 = vdwg.mxu0
  %579 = vmatpush.msra.mxu0 0.0
  %580 = vmatpush.msra.mxu0 0.0
  %581 = vmatpush.msra.mxu0 0.0
  %582 = vmatpush.msra.mxu0 0.0
  %583 = vmatpush.msra.mxu0 0.0
  %584 = vmatpush.msra.mxu0 0.0
  %585 = vmatpush.msra.mxu0 0.0
  %586 = vmatpush.msra.mxu0 0.0
  %587 = vmatpush.msra.mxu0 0.0
  %588 = vmatpush.msra.mxu0 0.0
  %589 = vmatpush.msra.mxu0 0.0
  %590 = vmatpush.msra.mxu0 0.0
  %591 = vmatpush.msra.mxu0 0.0
  %592 = vmatpush.msra.mxu0 0.0
  %593 = vmatpush.msra.mxu0 0.0
  %v594 = vand.u32 %v63, 4294901760
  %595 = vmatpush.msra.mxu0 %v594
  %v596 = vand.u32 %v54, 4294901760
  %v597 = vsub.f32 %v54, %v596
  %v598 = vand.u32 %v597, 4294901760
  %599 = vmatmul.f32.gmra.mxu0 %v598
  %v600 = vpop.f32.mrf.mxu0
  %v601 = vadd.f32 %v577, %v600
  %602 = vdwg.mxu0
  %603 = vmatpush.msra.mxu0 0.0
  %604 = vmatpush.msra.mxu0 0.0
  %605 = vmatpush.msra.mxu0 0.0
  %606 = vmatpush.msra.mxu0 0.0
  %607 = vmatpush.msra.mxu0 0.0
  %608 = vmatpush.msra.mxu0 0.0
  %609 = vmatpush.msra.mxu0 0.0
  %610 = vmatpush.msra.mxu0 0.0
  %611 = vmatpush.msra.mxu0 0.0
  %612 = vmatpush.msra.mxu0 0.0
  %613 = vmatpush.msra.mxu0 0.0
  %614 = vmatpush.msra.mxu0 0.0
  %615 = vmatpush.msra.mxu0 0.0
  %616 = vmatpush.msra.mxu0 0.0
  %617 = vmatpush.msra.mxu0 0.0
  %v618 = vand.u32 %v63, 4294901760
  %v619 = vsub.f32 %v63, %v618
  %v620 = vand.u32 %v619, 4294901760
  %621 = vmatpush.msra.mxu0 %v620
  %v622 = vand.u32 %v54, 4294901760
  %623 = vmatmul.f32.gmra.mxu0 %v622
  %v624 = vpop.f32.mrf.mxu0
  %v625 = vadd.f32 %v601, %v624
  %626 = vdwg.mxu0
  %627 = vmatpush.msra.mxu0 0.0
  %628 = vmatpush.msra.mxu0 0.0
  %629 = vmatpush.msra.mxu0 0.0
  %630 = vmatpush.msra.mxu0 0.0
  %631 = vmatpush.msra.mxu0 0.0
  %632 = vmatpush.msra.mxu0 0.0
  %633 = vmatpush.msra.mxu0 0.0
  %634 = vmatpush.msra.mxu0 0.0
  %635 = vmatpush.msra.mxu0 0.0
  %636 = vmatpush.msra.mxu0 0.0
  %637 = vmatpush.msra.mxu0 0.0
  %638 = vmatpush.msra.mxu0 0.0
  %639 = vmatpush.msra.mxu0 0.0
  %640 = vmatpush.msra.mxu0 0.0
  %641 = vmatpush.msra.mxu0 0.0
  %v642 = vand.u32 %v63, 4294901760
  %643 = vmatpush.msra.mxu0 %v642
  %v644 = vand.u32 %v54, 4294901760
  %645 = vmatmul.f32.gmra.mxu0 %v644
  %v646 = vpop.f32.mrf.mxu0
  %v647 = vadd.f32 %v625, %v646
  %648 = vdwg.mxu0
  %v649 = vmax.f32 %v209, 0.0
  %v650 = vmax.f32 %v355, 0.0
  %v651 = vmax.f32 %v501, 0.0
  %v652 = vmax.f32 %v647, 0.0
  %vm653 = vcmask 1044344
  %654 = vst.msk [vmem:[#allocation3] sm:$0xf] %vm653, 0.0
  %vm655 = vcmask 134144
  %656 = vst.msk [vmem:[#allocation3 + $0x14] sm:$0xf] %vm655, 0.0
  %v661 = vrot.slane %v650, 4
  %v662 = vrot.slane %v652, 4
  %v663 = vsel %vm56, %v649, %v661
  %v664 = vsel %vm56, %v651, %v662
  %667 = vst [vmem:[#allocation3 + $0x4] sm:$0xff] %v663
  %668 = vst [vmem:[#allocation3 + $0xc] sm:$0xff] %v664
  %669 = vst [vmem:[#allocation4 + $0x40] sm:$0xf] %v649
  %670 = vst [vmem:[#allocation4 + $0x48] sm:$0xf] %v650
  %671 = vst [vmem:[#allocation4 + $0x50] sm:$0xf] %v651
  %672 = vst [vmem:[#allocation4 + $0x58] sm:$0xf] %v652
  %v673 = vld [vmem:[#allocation3] sm:$0xff]
  %v674 = vld [vmem:[#allocation3 + $0x8] sm:$0xff]
  %v675 = vld [vmem:[#allocation3 + $0x10] sm:$0xf]
  %v676 = vld [vmem:[%s7] ss:$8 sm:$0xf]
  %v678 = vperm.slane %v676, 0
  %v679 = vperm.slane %v676, 1
  %v680 = vperm.slane %v676, 2
  %v681 = vperm.slane %v676, 3
  %v682 = vrot.slane %v679, 4
  %v683 = vrot.slane %v681, 4
  %v684 = vsel %vm56, %v678, %v682
  %v685 = vsel %vm56, %v680, %v683
  %686 = vrot.lane.b32.xlu0 %v684, 111
  %v687 = vpop.permute.xlu0 %686
  %688 = vrot.lane.b32.xlu0 %v685, 111
  %v689 = vpop.permute.xlu0 %688
  %v690 = vrot.slane %v687, 4
  %v691 = vrot.slane %v689, 4
  %vm692 = vcmask 908288
  %v693 = vsel %vm692, %v690, %v687
  %v694 = vsel %vm56, %v690, %v691
  %v695 = vsel %vm692, %v694, %v689
  %v699 = vmul.f32 %v673, %v693
  %v700 = vmul.f32 %v674, %v695
  %v701 = vmul.f32 %v675, %v691
  %705 = vst [vmem:[#allocation1] ss:$2 sm:$0xff] %v699
  %s706 = scalar_lea.vmem [#allocation1], 16
  %707 = vst [vmem:[%s706] ss:$2 sm:$0xff] %v700
  %s708 = scalar_lea.vmem [#allocation1], 32
  %709 = vst [vmem:[%s708] ss:$2 sm:$0xff] %v701
  %v710 = vld.sshfl [vmem:[#allocation1] sm:$0xff pattern:$0x75316420]
  %v711 = vld.sshfl [vmem:[#allocation1 + $0x8] sm:$0xff pattern:$0x75316420]
  %v712 = vld.sshfl [vmem:[#allocation1 + $0x10] sm:$0xff pattern:$0x75316420]
  %v713 = vld.sshfl [vmem:[#allocation1 + $0x18] sm:$0xff pattern:$0x75316420]
  %v714 = vld.sshfl [vmem:[#allocation1 + $0x20] sm:$0xff pattern:$0x75316420]
  %715 = vrot.lane.b32.xlu0 %v710, 17
  %v716 = vpop.permute.xlu0 %715
  %717 = vrot.lane.b32.xlu0 %v711, 17
  %v718 = vpop.permute.xlu0 %717
  %719 = vrot.lane.b32.xlu0 %v712, 17
  %v720 = vpop.permute.xlu0 %719
  %721 = vrot.lane.b32.xlu0 %v713, 17
  %v722 = vpop.permute.xlu0 %721
  %723 = vrot.lane.b32.xlu0 %v714, 17
  %v724 = vpop.permute.xlu0 %723
  %vm725 = vcmask 138240
  %v726 = vsel %vm725, %v716, %v718
  %v727 = vsel %vm725, %v718, %v720
  %v728 = vsel %vm725, %v720, %v722
  %v729 = vsel %vm725, %v722, %v724
  %734 = vst [vmem:[#allocation4] sm:$0xf] %v726
  %735 = vst [vmem:[#allocation4 + $0x8] sm:$0xf] %v727
  %736 = vst [vmem:[#allocation4 + $0x10] sm:$0xf] %v728
  %737 = vst [vmem:[#allocation4 + $0x18] sm:$0xf] %v729
  %v738 = vld [vmem:[#allocation3] sm:$0xff]
  %v739 = vld [vmem:[#allocation3 + $0x8] sm:$0xff]
  %v740 = vld [vmem:[#allocation3 + $0x10] sm:$0xf]
  %s741 = scalar_lea.vmem %s7, 1
  %v742 = vld [vmem:[%s741] ss:$8 sm:$0xf]
  %v744 = vperm.slane %v742, 0
  %v745 = vperm.slane %v742, 1
  %v746 = vperm.slane %v742, 2
  %v747 = vperm.slane %v742, 3
  %v748 = vrot.slane %v745, 4
  %v749 = vrot.slane %v747, 4
  %v750 = vsel %vm56, %v744, %v748
  %v751 = vsel %vm56, %v746, %v749
  %752 = vrot.lane.b32.xlu0 %v750, 112
  %v753 = vpop.permute.xlu0 %752
  %754 = vrot.lane.b32.xlu0 %v751, 112
  %v755 = vpop.permute.xlu0 %754
  %v756 = vrot.slane %v753, 4
  %v757 = vrot.slane %v755, 4
  %vm758 = vcmask 916480
  %v759 = vsel %vm758, %v756, %v753
  %v760 = vsel %vm56, %v756, %v757
  %v761 = vsel %vm758, %v760, %v755
  %v765 = vmul.f32 %v738, %v759
  %v766 = vmul.f32 %v739, %v761
  %v767 = vmul.f32 %v740, %v757
  %s771 = scalar_lea.vmem [#allocation1], 1
  %772 = vst [vmem:[%s771] ss:$2 sm:$0xff] %v765
  %s773 = scalar_lea.vmem [#allocation1], 17
  %774 = vst [vmem:[%s773] ss:$2 sm:$0xff] %v766
  %s775 = scalar_lea.vmem [#allocation1], 33
  %776 = vst [vmem:[%s775] ss:$2 sm:$0xff] %v767
  %v777 = vld.sshfl [vmem:[#allocation1] sm:$0xff pattern:$0x75316420]
  %v778 = vld.sshfl [vmem:[#allocation1 + $0x8] sm:$0xff pattern:$0x75316420]
  %v779 = vld.sshfl [vmem:[#allocation1 + $0x10] sm:$0xff pattern:$0x75316420]
  %v780 = vld.sshfl [vmem:[#allocation1 + $0x18] sm:$0xff pattern:$0x75316420]
  %v781 = vld.sshfl [vmem:[#allocation1 + $0x20] sm:$0xff pattern:$0x75316420]
  %782 = vrot.lane.b32.xlu0 %v777, 16
  %v783 = vpop.permute.xlu0 %782
  %784 = vrot.lane.b32.xlu0 %v778, 16
  %v785 = vpop.permute.xlu0 %784
  %786 = vrot.lane.b32.xlu0 %v779, 16
  %v787 = vpop.permute.xlu0 %786
  %788 = vrot.lane.b32.xlu0 %v780, 16
  %v789 = vpop.permute.xlu0 %788
  %790 = vrot.lane.b32.xlu0 %v781, 16
  %v791 = vpop.permute.xlu0 %790
  %vm792 = vcmask 130048
  %v793 = vsel %vm792, %v783, %v785
  %v794 = vsel %vm792, %v785, %v787
  %v795 = vsel %vm792, %v787, %v789
  %v796 = vsel %vm792, %v789, %v791
  %801 = vst [vmem:[#allocation4] sm:$0xf0] %v793
  %802 = vst [vmem:[#allocation4 + $0x8] sm:$0xf0] %v794
  %803 = vst [vmem:[#allocation4 + $0x10] sm:$0xf0] %v795
  %804 = vst [vmem:[#allocation4 + $0x18] sm:$0xf0] %v796
  %v805 = vld [vmem:[#allocation3] sm:$0xff]
  %v806 = vld [vmem:[#allocation3 + $0x8] sm:$0xff]
  %v807 = vld [vmem:[#allocation3 + $0x10] sm:$0xf]
  %s808 = scalar_lea.vmem %s7, 2
  %v809 = vld [vmem:[%s808] ss:$8 sm:$0xf]
  %v811 = vperm.slane %v809, 0
  %v812 = vperm.slane %v809, 1
  %v813 = vperm.slane %v809, 2
  %v814 = vperm.slane %v809, 3
  %v815 = vrot.slane %v812, 4
  %v816 = vrot.slane %v814, 4
  %v817 = vsel %vm56, %v811, %v815
  %v818 = vsel %vm56, %v813, %v816
  %819 = vrot.lane.b32.xlu0 %v817, 113
  %v820 = vpop.permute.xlu0 %819
  %821 = vrot.lane.b32.xlu0 %v818, 113
  %v822 = vpop.permute.xlu0 %821
  %v823 = vrot.slane %v820, 4
  %v824 = vrot.slane %v822, 4
  %vm825 = vcmask 924672
  %v826 = vsel %vm825, %v823, %v820
  %v827 = vsel %vm56, %v823, %v824
  %v828 = vsel %vm825, %v827, %v822
  %v832 = vmul.f32 %v805, %v826
  %v833 = vmul.f32 %v806, %v828
  %v834 = vmul.f32 %v807, %v824
  %838 = vst [vmem:[#allocation1] ss:$2 sm:$0xff] %v832
  %s839 = scalar_lea.vmem [#allocation1], 16
  %840 = vst [vmem:[%s839] ss:$2 sm:$0xff] %v833
  %s841 = scalar_lea.vmem [#allocation1], 32
  %842 = vst [vmem:[%s841] ss:$2 sm:$0xff] %v834
  %v843 = vld.sshfl [vmem:[#allocation1] sm:$0xff pattern:$0x75316420]
  %v844 = vld.sshfl [vmem:[#allocation1 + $0x8] sm:$0xff pattern:$0x75316420]
  %v845 = vld.sshfl [vmem:[#allocation1 + $0x10] sm:$0xff pattern:$0x75316420]
  %v846 = vld.sshfl [vmem:[#allocation1 + $0x18] sm:$0xff pattern:$0x75316420]
  %v847 = vld.sshfl [vmem:[#allocation1 + $0x20] sm:$0xff pattern:$0x75316420]
  %848 = vrot.lane.b32.xlu0 %v843, 15
  %v849 = vpop.permute.xlu0 %848
  %850 = vrot.lane.b32.xlu0 %v844, 15
  %v851 = vpop.permute.xlu0 %850
  %852 = vrot.lane.b32.xlu0 %v845, 15
  %v853 = vpop.permute.xlu0 %852
  %854 = vrot.lane.b32.xlu0 %v846, 15
  %v855 = vpop.permute.xlu0 %854
  %856 = vrot.lane.b32.xlu0 %v847, 15
  %v857 = vpop.permute.xlu0 %856
  %vm858 = vcmask 121856
  %v859 = vsel %vm858, %v849, %v851
  %v860 = vsel %vm858, %v851, %v853
  %v861 = vsel %vm858, %v853, %v855
  %v862 = vsel %vm858, %v855, %v857
  %867 = vst [vmem:[#allocation4 + $0x20] sm:$0xf] %v859
  %868 = vst [vmem:[#allocation4 + $0x28] sm:$0xf] %v860
  %869 = vst [vmem:[#allocation4 + $0x30] sm:$0xf] %v861
  %870 = vst [vmem:[#allocation4 + $0x38] sm:$0xf] %v862
  %v871 = vld [vmem:[#allocation3] sm:$0xff]
  %v872 = vld [vmem:[#allocation3 + $0x8] sm:$0xff]
  %v873 = vld [vmem:[#allocation3 + $0x10] sm:$0xf]
  %s874 = scalar_lea.vmem %s7, 3
  %v875 = vld [vmem:[%s874] ss:$8 sm:$0xf]
  %v877 = vperm.slane %v875, 0
  %v878 = vperm.slane %v875, 1
  %v879 = vperm.slane %v875, 2
  %v880 = vperm.slane %v875, 3
  %v881 = vrot.slane %v878, 4
  %v882 = vrot.slane %v880, 4
  %v883 = vsel %vm56, %v877, %v881
  %v884 = vsel %vm56, %v879, %v882
  %885 = vrot.lane.b32.xlu0 %v883, 127
  %v886 = vpop.permute.xlu0 %885
  %887 = vrot.lane.b32.xlu0 %v884, 127
  %v888 = vpop.permute.xlu0 %887
  %v889 = vrot.slane %v886, 4
  %v890 = vrot.slane %v888, 4
  %vm891 = vcmask 1039360
  %v892 = vsel %vm891, %v889, %v886
  %v893 = vsel %vm56, %v889, %v890
  %v894 = vsel %vm891, %v893, %v888
  %v898 = vmul.f32 %v871, %v892
  %v899 = vmul.f32 %v872, %v894
  %v900 = vmul.f32 %v873, %v890
  %s904 = scalar_lea.vmem [#allocation1], 1
  %905 = vst [vmem:[%s904] ss:$2 sm:$0xff] %v898
  %s906 = scalar_lea.vmem [#allocation1], 17
  %907 = vst [vmem:[%s906] ss:$2 sm:$0xff] %v899
  %s908 = scalar_lea.vmem [#allocation1], 33
  %909 = vst [vmem:[%s908] ss:$2 sm:$0xff] %v900
  %v910 = vld.sshfl [vmem:[#allocation1] sm:$0xff pattern:$0x75316420]
  %v911 = vld.sshfl [vmem:[#allocation1 + $0x8] sm:$0xff pattern:$0x75316420]
  %v912 = vld.sshfl [vmem:[#allocation1 + $0x10] sm:$0xff pattern:$0x75316420]
  %v913 = vld.sshfl [vmem:[#allocation1 + $0x18] sm:$0xff pattern:$0x75316420]
  %v914 = vld.sshfl [vmem:[#allocation1 + $0x20] sm:$0xff pattern:$0x75316420]
  %915 = vrot.lane.b32.xlu0 %v910, 1
  %v916 = vpop.permute.xlu0 %915
  %917 = vrot.lane.b32.xlu0 %v911, 1
  %v918 = vpop.permute.xlu0 %917
  %919 = vrot.lane.b32.xlu0 %v912, 1
  %v920 = vpop.permute.xlu0 %919
  %921 = vrot.lane.b32.xlu0 %v913, 1
  %v922 = vpop.permute.xlu0 %921
  %923 = vrot.lane.b32.xlu0 %v914, 1
  %v924 = vpop.permute.xlu0 %923
  %vm925 = vcmask 7168
  %v926 = vsel %vm925, %v916, %v918
  %v927 = vsel %vm925, %v918, %v920
  %v928 = vsel %vm925, %v920, %v922
  %v929 = vsel %vm925, %v922, %v924
  %934 = vst [vmem:[#allocation4 + $0x20] sm:$0xf0] %v926
  %935 = vst [vmem:[#allocation4 + $0x28] sm:$0xf0] %v927
  %936 = vst [vmem:[#allocation4 + $0x30] sm:$0xf0] %v928
  %937 = vst [vmem:[#allocation4 + $0x38] sm:$0xf0] %v929
  %v938 = vld [vmem:[#allocation3 + $0x4] sm:$0xff]
  %v939 = vld [vmem:[#allocation3 + $0xc] sm:$0xff]
  %v940 = vld [vmem:[#allocation3 + $0x14] sm:$0xf]
  %s941 = scalar_lea.vmem %s7, 5
  %v942 = vld [vmem:[%s941] ss:$8 sm:$0xf]
  %v944 = vperm.slane %v942, 0
  %v945 = vperm.slane %v942, 1
  %v946 = vperm.slane %v942, 2
  %v947 = vperm.slane %v942, 3
  %v948 = vrot.slane %v945, 4
  %v949 = vrot.slane %v947, 4
  %v950 = vsel %vm56, %v944, %v948
  %v951 = vsel %vm56, %v946, %v949
  %952 = vrot.lane.b32.xlu0 %v950, 1
  %v953 = vpop.permute.xlu0 %952
  %954 = vrot.lane.b32.xlu0 %v951, 1
  %v955 = vpop.permute.xlu0 %954
  %v956 = vrot.slane %v953, 4
  %v957 = vrot.slane %v955, 4
  %v958 = vsel %vm925, %v956, %v953
  %v959 = vsel %vm56, %v956, %v957
  %v960 = vsel %vm925, %v959, %v955
  %v964 = vmul.f32 %v938, %v958
  %v965 = vmul.f32 %v939, %v960
  %v966 = vmul.f32 %v940, %v957
  %s970 = scalar_lea.vmem [#allocation1], 1
  %971 = vst [vmem:[%s970] ss:$2 sm:$0xff] %v964
  %s972 = scalar_lea.vmem [#allocation1], 17
  %973 = vst [vmem:[%s972] ss:$2 sm:$0xff] %v965
  %s974 = scalar_lea.vmem [#allocation1], 33
  %975 = vst [vmem:[%s974] ss:$2 sm:$0xff] %v966
  %v976 = vld.sshfl [vmem:[#allocation1] sm:$0xff pattern:$0x75316420]
  %v977 = vld.sshfl [vmem:[#allocation1 + $0x8] sm:$0xff pattern:$0x75316420]
  %v978 = vld.sshfl [vmem:[#allocation1 + $0x10] sm:$0xff pattern:$0x75316420]
  %v979 = vld.sshfl [vmem:[#allocation1 + $0x18] sm:$0xff pattern:$0x75316420]
  %v980 = vld.sshfl [vmem:[#allocation1 + $0x20] sm:$0xff pattern:$0x75316420]
  %981 = vrot.lane.b32.xlu0 %v976, 127
  %v982 = vpop.permute.xlu0 %981
  %983 = vrot.lane.b32.xlu0 %v977, 127
  %v984 = vpop.permute.xlu0 %983
  %985 = vrot.lane.b32.xlu0 %v978, 127
  %v986 = vpop.permute.xlu0 %985
  %987 = vrot.lane.b32.xlu0 %v979, 127
  %v988 = vpop.permute.xlu0 %987
  %989 = vrot.lane.b32.xlu0 %v980, 127
  %v990 = vpop.permute.xlu0 %989
  %v991 = vsel %vm891, %v982, %v984
  %v992 = vsel %vm891, %v984, %v986
  %v993 = vsel %vm891, %v986, %v988
  %v994 = vsel %vm891, %v988, %v990
  %999 = vst [vmem:[#allocation4 + $0x40] sm:$0xf0] %v991
  %1000 = vst [vmem:[#allocation4 + $0x48] sm:$0xf0] %v992
  %1001 = vst [vmem:[#allocation4 + $0x50] sm:$0xf0] %v993
  %1002 = vst [vmem:[#allocation4 + $0x58] sm:$0xf0] %v994
  %v1003 = vld [vmem:[#allocation3 + $0x4] sm:$0xff]
  %v1004 = vld [vmem:[#allocation3 + $0xc] sm:$0xff]
  %v1005 = vld [vmem:[#allocation3 + $0x14] sm:$0xf]
  %s1006 = scalar_lea.vmem %s7, 6
  %v1007 = vld [vmem:[%s1006] ss:$8 sm:$0xf]
  %v1009 = vperm.slane %v1007, 0
  %v1010 = vperm.slane %v1007, 1
  %v1011 = vperm.slane %v1007, 2
  %v1012 = vperm.slane %v1007, 3
  %v1013 = vrot.slane %v1010, 4
  %v1014 = vrot.slane %v1012, 4
  %v1015 = vsel %vm56, %v1009, %v1013
  %v1016 = vsel %vm56, %v1011, %v1014
  %1017 = vrot.lane.b32.xlu0 %v1015, 15
  %v1018 = vpop.permute.xlu0 %1017
  %1019 = vrot.lane.b32.xlu0 %v1016, 15
  %v1020 = vpop.permute.xlu0 %1019
  %v1021 = vrot.slane %v1018, 4
  %v1022 = vrot.slane %v1020, 4
  %v1023 = vsel %vm858, %v1021, %v1018
  %v1024 = vsel %vm56, %v1021, %v1022
  %v1025 = vsel %vm858, %v1024, %v1020
  %v1029 = vmul.f32 %v1003, %v1023
  %v1030 = vmul.f32 %v1004, %v1025
  %v1031 = vmul.f32 %v1005, %v1022
  %1035 = vst [vmem:[#allocation1] ss:$2 sm:$0xff] %v1029
  %s1036 = scalar_lea.vmem [#allocation1], 16
  %1037 = vst [vmem:[%s1036] ss:$2 sm:$0xff] %v1030
  %s1038 = scalar_lea.vmem [#allocation1], 32
  %1039 = vst [vmem:[%s1038] ss:$2 sm:$0xff] %v1031
  %v1040 = vld.sshfl [vmem:[#allocation1] sm:$0xff pattern:$0x75316420]
  %v1041 = vld.sshfl [vmem:[#allocation1 + $0x8] sm:$0xff pattern:$0x75316420]
  %v1042 = vld.sshfl [vmem:[#allocation1 + $0x10] sm:$0xff pattern:$0x75316420]
  %v1043 = vld.sshfl [vmem:[#allocation1 + $0x18] sm:$0xff pattern:$0x75316420]
  %v1044 = vld.sshfl [vmem:[#allocation1 + $0x20] sm:$0xff pattern:$0x75316420]
  %1045 = vrot.lane.b32.xlu0 %v1040, 113
  %v1046 = vpop.permute.xlu0 %1045
  %1047 = vrot.lane.b32.xlu0 %v1041, 113
  %v1048 = vpop.permute.xlu0 %1047
  %1049 = vrot.lane.b32.xlu0 %v1042, 113
  %v1050 = vpop.permute.xlu0 %1049
  %1051 = vrot.lane.b32.xlu0 %v1043, 113
  %v1052 = vpop.permute.xlu0 %1051
  %1053 = vrot.lane.b32.xlu0 %v1044, 113
  %v1054 = vpop.permute.xlu0 %1053
  %v1055 = vsel %vm825, %v1046, %v1048
  %v1056 = vsel %vm825, %v1048, %v1050
  %v1057 = vsel %vm825, %v1050, %v1052
  %v1058 = vsel %vm825, %v1052, %v1054
  %1063 = vst [vmem:[#allocation4 + $0x60] sm:$0xf] %v1055
  %1064 = vst [vmem:[#allocation4 + $0x68] sm:$0xf] %v1056
  %1065 = vst [vmem:[#allocation4 + $0x70] sm:$0xf] %v1057
  %1066 = vst [vmem:[#allocation4 + $0x78] sm:$0xf] %v1058
  %v1067 = vld [vmem:[#allocation3 + $0x4] sm:$0xff]
  %v1068 = vld [vmem:[#allocation3 + $0xc] sm:$0xff]
  %v1069 = vld [vmem:[#allocation3 + $0x14] sm:$0xf]
  %s1070 = scalar_lea.vmem %s7, 7
  %v1071 = vld [vmem:[%s1070] ss:$8 sm:$0xf]
  %v1073 = vperm.slane %v1071, 0
  %v1074 = vperm.slane %v1071, 1
  %v1075 = vperm.slane %v1071, 2
  %v1076 = vperm.slane %v1071, 3
  %v1077 = vrot.slane %v1074, 4
  %v1078 = vrot.slane %v1076, 4
  %v1079 = vsel %vm56, %v1073, %v1077
  %v1080 = vsel %vm56, %v1075, %v1078
  %1081 = vrot.lane.b32.xlu0 %v1079, 16
  %v1082 = vpop.permute.xlu0 %1081
  %1083 = vrot.lane.b32.xlu0 %v1080, 16
  %v1084 = vpop.permute.xlu0 %1083
  %v1085 = vrot.slane %v1082, 4
  %v1086 = vrot.slane %v1084, 4
  %v1087 = vsel %vm792, %v1085, %v1082
  %v1088 = vsel %vm56, %v1085, %v1086
  %v1089 = vsel %vm792, %v1088, %v1084
  %v1093 = vmul.f32 %v1067, %v1087
  %v1094 = vmul.f32 %v1068, %v1089
  %v1095 = vmul.f32 %v1069, %v1086
  %s1099 = scalar_lea.vmem [#allocation1], 1
  %1100 = vst [vmem:[%s1099] ss:$2 sm:$0xff] %v1093
  %s1101 = scalar_lea.vmem [#allocation1], 17
  %1102 = vst [vmem:[%s1101] ss:$2 sm:$0xff] %v1094
  %s1103 = scalar_lea.vmem [#allocation1], 33
  %1104 = vst [vmem:[%s1103] ss:$2 sm:$0xff] %v1095
  %v1105 = vld.sshfl [vmem:[#allocation1] sm:$0xff pattern:$0x75316420]
  %v1106 = vld.sshfl [vmem:[#allocation1 + $0x8] sm:$0xff pattern:$0x75316420]
  %v1107 = vld.sshfl [vmem:[#allocation1 + $0x10] sm:$0xff pattern:$0x75316420]
  %v1108 = vld.sshfl [vmem:[#allocation1 + $0x18] sm:$0xff pattern:$0x75316420]
  %v1109 = vld.sshfl [vmem:[#allocation1 + $0x20] sm:$0xff pattern:$0x75316420]
  %1110 = vrot.lane.b32.xlu0 %v1105, 112
  %v1111 = vpop.permute.xlu0 %1110
  %1112 = vrot.lane.b32.xlu0 %v1106, 112
  %v1113 = vpop.permute.xlu0 %1112
  %1114 = vrot.lane.b32.xlu0 %v1107, 112
  %v1115 = vpop.permute.xlu0 %1114
  %1116 = vrot.lane.b32.xlu0 %v1108, 112
  %v1117 = vpop.permute.xlu0 %1116
  %1118 = vrot.lane.b32.xlu0 %v1109, 112
  %v1119 = vpop.permute.xlu0 %1118
  %v1120 = vsel %vm758, %v1111, %v1113
  %v1121 = vsel %vm758, %v1113, %v1115
  %v1122 = vsel %vm758, %v1115, %v1117
  %v1123 = vsel %vm758, %v1117, %v1119
  %1128 = vst [vmem:[#allocation4 + $0x60] sm:$0xf0] %v1120
  %1129 = vst [vmem:[#allocation4 + $0x68] sm:$0xf0] %v1121
  %1130 = vst [vmem:[#allocation4 + $0x70] sm:$0xf0] %v1122
  %1131 = vst [vmem:[#allocation4 + $0x78] sm:$0xf0] %v1123
  %v1132 = vld [vmem:[#allocation3 + $0x4] sm:$0xff]
  %v1133 = vld [vmem:[#allocation3 + $0xc] sm:$0xff]
  %v1134 = vld [vmem:[#allocation3 + $0x14] sm:$0xf]
  %s1135 = scalar_lea.vmem %s7, 32
  %v1136 = vld [vmem:[%s1135] ss:$8 sm:$0xf]
  %v1138 = vperm.slane %v1136, 0
  %v1139 = vperm.slane %v1136, 1
  %v1140 = vperm.slane %v1136, 2
  %v1141 = vperm.slane %v1136, 3
  %v1142 = vrot.slane %v1139, 4
  %v1143 = vrot.slane %v1141, 4
  %v1144 = vsel %vm56, %v1138, %v1142
  %v1145 = vsel %vm56, %v1140, %v1143
  %1146 = vrot.lane.b32.xlu0 %v1144, 17
  %v1147 = vpop.permute.xlu0 %1146
  %1148 = vrot.lane.b32.xlu0 %v1145, 17
  %v1149 = vpop.permute.xlu0 %1148
  %v1150 = vrot.slane %v1147, 4
  %v1151 = vrot.slane %v1149, 4
  %v1152 = vsel %vm725, %v1150, %v1147
  %v1153 = vsel %vm56, %v1150, %v1151
  %v1154 = vsel %vm725, %v1153, %v1149
  %v1158 = vmul.f32 %v1132, %v1152
  %v1159 = vmul.f32 %v1133, %v1154
  %v1160 = vmul.f32 %v1134, %v1151
  %1164 = vst [vmem:[#allocation1] ss:$2 sm:$0xff] %v1158
  %s1165 = scalar_lea.vmem [#allocation1], 16
  %1166 = vst [vmem:[%s1165] ss:$2 sm:$0xff] %v1159
  %s1167 = scalar_lea.vmem [#allocation1], 32
  %1168 = vst [vmem:[%s1167] ss:$2 sm:$0xff] %v1160
  %v1169 = vld.sshfl [vmem:[#allocation1] sm:$0xff pattern:$0x75316420]
  %v1170 = vld.sshfl [vmem:[#allocation1 + $0x8] sm:$0xff pattern:$0x75316420]
  %v1171 = vld.sshfl [vmem:[#allocation1 + $0x10] sm:$0xff pattern:$0x75316420]
  %v1172 = vld.sshfl [vmem:[#allocation1 + $0x18] sm:$0xff pattern:$0x75316420]
  %v1173 = vld.sshfl [vmem:[#allocation1 + $0x20] sm:$0xff pattern:$0x75316420]
  %1174 = vrot.lane.b32.xlu0 %v1169, 111
  %v1175 = vpop.permute.xlu0 %1174
  %1176 = vrot.lane.b32.xlu0 %v1170, 111
  %v1177 = vpop.permute.xlu0 %1176
  %1178 = vrot.lane.b32.xlu0 %v1171, 111
  %v1179 = vpop.permute.xlu0 %1178
  %1180 = vrot.lane.b32.xlu0 %v1172, 111
  %v1181 = vpop.permute.xlu0 %1180
  %1182 = vrot.lane.b32.xlu0 %v1173, 111
  %v1183 = vpop.permute.xlu0 %1182
  %v1184 = vsel %vm692, %v1175, %v1177
  %v1185 = vsel %vm692, %v1177, %v1179
  %v1186 = vsel %vm692, %v1179, %v1181
  %v1187 = vsel %vm692, %v1181, %v1183
  %1192 = vst [vmem:[#allocation4 + $0x80] sm:$0xf] %v1184
  %1193 = vst [vmem:[#allocation4 + $0x88] sm:$0xf] %v1185
  %1194 = vst [vmem:[#allocation4 + $0x90] sm:$0xf] %v1186
  %1195 = vst [vmem:[#allocation4 + $0x98] sm:$0xf] %v1187
  %v1196 = vld [vmem:[%s3] sm:$0xf]
  %v1197 = vld [vmem:[#allocation4] sm:$0xff]
  %v1198 = vld [vmem:[#allocation4 + $0x8] sm:$0xff]
  %v1199 = vld [vmem:[#allocation4 + $0x10] sm:$0xff]
  %v1200 = vld [vmem:[#allocation4 + $0x18] sm:$0xff]
  %v1201 = vld [vmem:[#allocation4 + $0x20] sm:$0xff]
  %v1202 = vld [vmem:[#allocation4 + $0x28] sm:$0xff]
  %v1203 = vld [vmem:[#allocation4 + $0x30] sm:$0xff]
  %v1204 = vld [vmem:[#allocation4 + $0x38] sm:$0xff]
  %v1205 = vld [vmem:[#allocation4 + $0x40] sm:$0xff]
  %v1206 = vld [vmem:[#allocation4 + $0x48] sm:$0xff]
  %v1207 = vld [vmem:[#allocation4 + $0x50] sm:$0xff]
  %v1208 = vld [vmem:[#allocation4 + $0x58] sm:$0xff]
  %v1209 = vld [vmem:[#allocation4 + $0x60] sm:$0xff]
  %v1210 = vld [vmem:[#allocation4 + $0x68] sm:$0xff]
  %v1211 = vld [vmem:[#allocation4 + $0x70] sm:$0xff]
  %v1212 = vld [vmem:[#allocation4 + $0x78] sm:$0xff]
  %v1213 = vld [vmem:[#allocation4 + $0x80] sm:$0xf]
  %v1214 = vld [vmem:[#allocation4 + $0x88] sm:$0xf]
  %v1215 = vld [vmem:[#allocation4 + $0x90] sm:$0xf]
  %v1216 = vld [vmem:[#allocation4 + $0x98] sm:$0xf]
  %v1217 = vld [vmem:[%s4] sm:$0xf]
  %1219 = vset.pattern.permute.xlu0 0
  %1220 = vperm.xlu0 %1219, %v1217
  %v1221 = vpop.permute.xlu0 %1220
  %vm1223 = vcmask 293888
  %v1225 = vsel %vm1223, %v1196, 0
  %v1228 = vsel %vm56, %v1213, 0
  %v1231 = vsel %vm56, %v1214, 0
  %v1234 = vsel %vm56, %v1215, 0
  %v1237 = vsel %vm56, %v1216, 0
  %1239 = vmatpush.msra.mxu0 0.0
  %1240 = vmatpush.msra.mxu0 0.0
  %1241 = vmatpush.msra.mxu0 0.0
  %1242 = vmatpush.msra.mxu0 0.0
  %1243 = vmatpush.msra.mxu0 0.0
  %1244 = vmatpush.msra.mxu0 0.0
  %1245 = vmatpush.msra.mxu0 0.0
  %1246 = vmatpush.msra.mxu0 0.0
  %1247 = vmatpush.msra.mxu0 0.0
  %1248 = vmatpush.msra.mxu0 0.0
  %1249 = vmatpush.msra.mxu0 0.0
  %v1250 = vand.u32 %v1228, 4294901760
  %1251 = vmatpush.msra.mxu0 %v1250
  %v1252 = vand.u32 %v1209, 4294901760
  %1253 = vmatpush.msra.mxu0 %v1252
  %v1254 = vand.u32 %v1205, 4294901760
  %1255 = vmatpush.msra.mxu0 %v1254
  %v1256 = vand.u32 %v1201, 4294901760
  %1257 = vmatpush.msra.mxu0 %v1256
  %v1258 = vand.u32 %v1197, 4294901760
  %1259 = vmatpush.msra.mxu0 %v1258
  %v1260 = vand.u32 %v1225, 4294901760
  %v1261 = vsub.f32 %v1225, %v1260
  %v1262 = vand.u32 %v1261, 4294901760
  %v1263 = vsub.f32 %v1261, %v1262
  %v1264 = vand.u32 %v1263, 4294901760
  %1265 = vmatmul.f32.gmra.mxu0 %v1264
  %v1266 = vpop.f32.mrf.mxu0
  %v1267 = vadd.f32 %v1221, %v1266
  %1268 = vdwg.mxu0
  %1269 = vmatpush.msra.mxu0 0.0
  %1270 = vmatpush.msra.mxu0 0.0
  %1271 = vmatpush.msra.mxu0 0.0
  %1272 = vmatpush.msra.mxu0 0.0
  %1273 = vmatpush.msra.mxu0 0.0
  %1274 = vmatpush.msra.mxu0 0.0
  %1275 = vmatpush.msra.mxu0 0.0
  %1276 = vmatpush.msra.mxu0 0.0
  %1277 = vmatpush.msra.mxu0 0.0
  %1278 = vmatpush.msra.mxu0 0.0
  %1279 = vmatpush.msra.mxu0 0.0
  %v1280 = vand.u32 %v1228, 4294901760
  %v1281 = vsub.f32 %v1228, %v1280
  %v1282 = vand.u32 %v1281, 4294901760
  %v1283 = vsub.f32 %v1281, %v1282
  %v1284 = vand.u32 %v1283, 4294901760
  %1285 = vmatpush.msra.mxu0 %v1284
  %v1286 = vand.u32 %v1209, 4294901760
  %v1287 = vsub.f32 %v1209, %v1286
  %v1288 = vand.u32 %v1287, 4294901760
  %v1289 = vsub.f32 %v1287, %v1288
  %v1290 = vand.u32 %v1289, 4294901760
  %1291 = vmatpush.msra.mxu0 %v1290
  %v1292 = vand.u32 %v1205, 4294901760
  %v1293 = vsub.f32 %v1205, %v1292
  %v1294 = vand.u32 %v1293, 4294901760
  %v1295 = vsub.f32 %v1293, %v1294
  %v1296 = vand.u32 %v1295, 4294901760
  %1297 = vmatpush.msra.mxu0 %v1296
  %v1298 = vand.u32 %v1201, 4294901760
  %v1299 = vsub.f32 %v1201, %v1298
  %v1300 = vand.u32 %v1299, 4294901760
  %v1301 = vsub.f32 %v1299, %v1300
  %v1302 = vand.u32 %v1301, 4294901760
  %1303 = vmatpush.msra.mxu0 %v1302
  %v1304 = vand.u32 %v1197, 4294901760
  %v1305 = vsub.f32 %v1197, %v1304
  %v1306 = vand.u32 %v1305, 4294901760
  %v1307 = vsub.f32 %v1305, %v1306
  %v1308 = vand.u32 %v1307, 4294901760
  %1309 = vmatpush.msra.mxu0 %v1308
  %v1310 = vand.u32 %v1225, 4294901760
  %1311 = vmatmul.f32.gmra.mxu0 %v1310
  %v1312 = vpop.f32.mrf.mxu0
  %v1313 = vadd.f32 %v1267, %v1312
  %1314 = vdwg.mxu0
  %1315 = vmatpush.msra.mxu0 0.0
  %1316 = vmatpush.msra.mxu0 0.0
  %1317 = vmatpush.msra.mxu0 0.0
  %1318 = vmatpush.msra.mxu0 0.0
  %1319 = vmatpush.msra.mxu0 0.0
  %1320 = vmatpush.msra.mxu0 0.0
  %1321 = vmatpush.msra.mxu0 0.0
  %1322 = vmatpush.msra.mxu0 0.0
  %1323 = vmatpush.msra.mxu0 0.0
  %1324 = vmatpush.msra.mxu0 0.0
  %1325 = vmatpush.msra.mxu0 0.0
  %v1326 = vand.u32 %v1228, 4294901760
  %v1327 = vsub.f32 %v1228, %v1326
  %1328 = vmatpush.msra.mxu0 %v1327
  %v1329 = vand.u32 %v1209, 4294901760
  %v1330 = vsub.f32 %v1209, %v1329
  %1331 = vmatpush.msra.mxu0 %v1330
  %v1332 = vand.u32 %v1205, 4294901760
  %v1333 = vsub.f32 %v1205, %v1332
  %1334 = vmatpush.msra.mxu0 %v1333
  %v1335 = vand.u32 %v1201, 4294901760
  %v1336 = vsub.f32 %v1201, %v1335
  %1337 = vmatpush.msra.mxu0 %v1336
  %v1338 = vand.u32 %v1197, 4294901760
  %v1339 = vsub.f32 %v1197, %v1338
  %1340 = vmatpush.msra.mxu0 %v1339
  %v1341 = vand.u32 %v1225, 4294901760
  %v1342 = vsub.f32 %v1225, %v1341
  %1343 = vmatmul.f32.gmra.mxu0 %v1342
  %v1344 = vpop.f32.mrf.mxu0
  %v1345 = vadd.f32 %v1313, %v1344
  %1346 = vdwg.mxu0
  %1347 = vmatpush.msra.mxu0 0.0
  %1348 = vmatpush.msra.mxu0 0.0
  %1349 = vmatpush.msra.mxu0 0.0
  %1350 = vmatpush.msra.mxu0 0.0
  %1351 = vmatpush.msra.mxu0 0.0
  %1352 = vmatpush.msra.mxu0 0.0
  %1353 = vmatpush.msra.mxu0 0.0
  %1354 = vmatpush.msra.mxu0 0.0
  %1355 = vmatpush.msra.mxu0 0.0
  %1356 = vmatpush.msra.mxu0 0.0
  %1357 = vmatpush.msra.mxu0 0.0
  %v1358 = vand.u32 %v1228, 4294901760
  %1359 = vmatpush.msra.mxu0 %v1358
  %v1360 = vand.u32 %v1209, 4294901760
  %1361 = vmatpush.msra.mxu0 %v1360
  %v1362 = vand.u32 %v1205, 4294901760
  %1363 = vmatpush.msra.mxu0 %v1362
  %v1364 = vand.u32 %v1201, 4294901760
  %1365 = vmatpush.msra.mxu0 %v1364
  %v1366 = vand.u32 %v1197, 4294901760
  %1367 = vmatpush.msra.mxu0 %v1366
  %v1368 = vand.u32 %v1225, 4294901760
  %v1369 = vsub.f32 %v1225, %v1368
  %v1370 = vand.u32 %v1369, 4294901760
  %1371 = vmatmul.f32.gmra.mxu0 %v1370
  %v1372 = vpop.f32.mrf.mxu0
  %v1373 = vadd.f32 %v1345, %v1372
  %1374 = vdwg.mxu0
  %1375 = vmatpush.msra.mxu0 0.0
  %1376 = vmatpush.msra.mxu0 0.0
  %1377 = vmatpush.msra.mxu0 0.0
  %1378 = vmatpush.msra.mxu0 0.0
  %1379 = vmatpush.msra.mxu0 0.0
  %1380 = vmatpush.msra.mxu0 0.0
  %1381 = vmatpush.msra.mxu0 0.0
  %1382 = vmatpush.msra.mxu0 0.0
  %1383 = vmatpush.msra.mxu0 0.0
  %1384 = vmatpush.msra.mxu0 0.0
  %1385 = vmatpush.msra.mxu0 0.0
  %v1386 = vand.u32 %v1228, 4294901760
  %v1387 = vsub.f32 %v1228, %v1386
  %v1388 = vand.u32 %v1387, 4294901760
  %1389 = vmatpush.msra.mxu0 %v1388
  %v1390 = vand.u32 %v1209, 4294901760
  %v1391 = vsub.f32 %v1209, %v1390
  %v1392 = vand.u32 %v1391, 4294901760
  %1393 = vmatpush.msra.mxu0 %v1392
  %v1394 = vand.u32 %v1205, 4294901760
  %v1395 = vsub.f32 %v1205, %v1394
  %v1396 = vand.u32 %v1395, 4294901760
  %1397 = vmatpush.msra.mxu0 %v1396
  %v1398 = vand.u32 %v1201, 4294901760
  %v1399 = vsub.f32 %v1201, %v1398
  %v1400 = vand.u32 %v1399, 4294901760
  %1401 = vmatpush.msra.mxu0 %v1400
  %v1402 = vand.u32 %v1197, 4294901760
  %v1403 = vsub.f32 %v1197, %v1402
  %v1404 = vand.u32 %v1403, 4294901760
  %1405 = vmatpush.msra.mxu0 %v1404
  %v1406 = vand.u32 %v1225, 4294901760
  %1407 = vmatmul.f32.gmra.mxu0 %v1406
  %v1408 = vpop.f32.mrf.mxu0
  %v1409 = vadd.f32 %v1373, %v1408
  %1410 = vdwg.mxu0
  %1411 = vmatpush.msra.mxu0 0.0
  %1412 = vmatpush.msra.mxu0 0.0
  %1413 = vmatpush.msra.mxu0 0.0
  %1414 = vmatpush.msra.mxu0 0.0
  %1415 = vmatpush.msra.mxu0 0.0
  %1416 = vmatpush.msra.mxu0 0.0
  %1417 = vmatpush.msra.mxu0 0.0
  %1418 = vmatpush.msra.mxu0 0.0
  %1419 = vmatpush.msra.mxu0 0.0
  %1420 = vmatpush.msra.mxu0 0.0
  %1421 = vmatpush.msra.mxu0 0.0
  %v1422 = vand.u32 %v1228, 4294901760
  %1423 = vmatpush.msra.mxu0 %v1422
  %v1424 = vand.u32 %v1209, 4294901760
  %1425 = vmatpush.msra.mxu0 %v1424
  %v1426 = vand.u32 %v1205, 4294901760
  %1427 = vmatpush.msra.mxu0 %v1426
  %v1428 = vand.u32 %v1201, 4294901760
  %1429 = vmatpush.msra.mxu0 %v1428
  %v1430 = vand.u32 %v1197, 4294901760
  %1431 = vmatpush.msra.mxu0 %v1430
  %v1432 = vand.u32 %v1225, 4294901760
  %1433 = vmatmul.f32.gmra.mxu0 %v1432
  %v1434 = vpop.f32.mrf.mxu0
  %v1435 = vadd.f32 %v1409, %v1434
  %1436 = vdwg.mxu0
  %1437 = vmatpush.msra.mxu0 0.0
  %1438 = vmatpush.msra.mxu0 0.0
  %1439 = vmatpush.msra.mxu0 0.0
  %1440 = vmatpush.msra.mxu0 0.0
  %1441 = vmatpush.msra.mxu0 0.0
  %1442 = vmatpush.msra.mxu0 0.0
  %1443 = vmatpush.msra.mxu0 0.0
  %1444 = vmatpush.msra.mxu0 0.0
  %1445 = vmatpush.msra.mxu0 0.0
  %1446 = vmatpush.msra.mxu0 0.0
  %1447 = vmatpush.msra.mxu0 0.0
  %v1448 = vand.u32 %v1231, 4294901760
  %1449 = vmatpush.msra.mxu0 %v1448
  %v1450 = vand.u32 %v1210, 4294901760
  %1451 = vmatpush.msra.mxu0 %v1450
  %v1452 = vand.u32 %v1206, 4294901760
  %1453 = vmatpush.msra.mxu0 %v1452
  %v1454 = vand.u32 %v1202, 4294901760
  %1455 = vmatpush.msra.mxu0 %v1454
  %v1456 = vand.u32 %v1198, 4294901760
  %1457 = vmatpush.msra.mxu0 %v1456
  %v1458 = vand.u32 %v1225, 4294901760
  %v1459 = vsub.f32 %v1225, %v1458
  %v1460 = vand.u32 %v1459, 4294901760
  %v1461 = vsub.f32 %v1459, %v1460
  %v1462 = vand.u32 %v1461, 4294901760
  %1463 = vmatmul.f32.gmra.mxu0 %v1462
  %v1464 = vpop.f32.mrf.mxu0
  %v1465 = vadd.f32 %v1221, %v1464
  %1466 = vdwg.mxu0
  %1467 = vmatpush.msra.mxu0 0.0
  %1468 = vmatpush.msra.mxu0 0.0
  %1469 = vmatpush.msra.mxu0 0.0
  %1470 = vmatpush.msra.mxu0 0.0
  %1471 = vmatpush.msra.mxu0 0.0
  %1472 = vmatpush.msra.mxu0 0.0
  %1473 = vmatpush.msra.mxu0 0.0
  %1474 = vmatpush.msra.mxu0 0.0
  %1475 = vmatpush.msra.mxu0 0.0
  %1476 = vmatpush.msra.mxu0 0.0
  %1477 = vmatpush.msra.mxu0 0.0
  %v1478 = vand.u32 %v1231, 4294901760
  %v1479 = vsub.f32 %v1231, %v1478
  %v1480 = vand.u32 %v1479, 4294901760
  %v1481 = vsub.f32 %v1479, %v1480
  %v1482 = vand.u32 %v1481, 4294901760
  %1483 = vmatpush.msra.mxu0 %v1482
  %v1484 = vand.u32 %v1210, 4294901760
  %v1485 = vsub.f32 %v1210, %v1484
  %v1486 = vand.u32 %v1485, 4294901760
  %v1487 = vsub.f32 %v1485, %v1486
  %v1488 = vand.u32 %v1487, 4294901760
  %1489 = vmatpush.msra.mxu0 %v1488
  %v1490 = vand.u32 %v1206, 4294901760
  %v1491 = vsub.f32 %v1206, %v1490
  %v1492 = vand.u32 %v1491, 4294901760
  %v1493 = vsub.f32 %v1491, %v1492
  %v1494 = vand.u32 %v1493, 4294901760
  %1495 = vmatpush.msra.mxu0 %v1494
  %v1496 = vand.u32 %v1202, 4294901760
  %v1497 = vsub.f32 %v1202, %v1496
  %v1498 = vand.u32 %v1497, 4294901760
  %v1499 = vsub.f32 %v1497, %v1498
  %v1500 = vand.u32 %v1499, 4294901760
  %1501 = vmatpush.msra.mxu0 %v1500
  %v1502 = vand.u32 %v1198, 4294901760
  %v1503 = vsub.f32 %v1198, %v1502
  %v1504 = vand.u32 %v1503, 4294901760
  %v1505 = vsub.f32 %v1503, %v1504
  %v1506 = vand.u32 %v1505, 4294901760
  %1507 = vmatpush.msra.mxu0 %v1506
  %v1508 = vand.u32 %v1225, 4294901760
  %1509 = vmatmul.f32.gmra.mxu0 %v1508
  %v1510 = vpop.f32.mrf.mxu0
  %v1511 = vadd.f32 %v1465, %v1510
  %1512 = vdwg.mxu0
  %1513 = vmatpush.msra.mxu0 0.0
  %1514 = vmatpush.msra.mxu0 0.0
  %1515 = vmatpush.msra.mxu0 0.0
  %1516 = vmatpush.msra.mxu0 0.0
  %1517 = vmatpush.msra.mxu0 0.0
  %1518 = vmatpush.msra.mxu0 0.0
  %1519 = vmatpush.msra.mxu0 0.0
  %1520 = vmatpush.msra.mxu0 0.0
  %1521 = vmatpush.msra.mxu0 0.0
  %1522 = vmatpush.msra.mxu0 0.0
  %1523 = vmatpush.msra.mxu0 0.0
  %v1524 = vand.u32 %v1231, 4294901760
  %v1525 = vsub.f32 %v1231, %v1524
  %1526 = vmatpush.msra.mxu0 %v1525
  %v1527 = vand.u32 %v1210, 4294901760
  %v1528 = vsub.f32 %v1210, %v1527
  %1529 = vmatpush.msra.mxu0 %v1528
  %v1530 = vand.u32 %v1206, 4294901760
  %v1531 = vsub.f32 %v1206, %v1530
  %1532 = vmatpush.msra.mxu0 %v1531
  %v1533 = vand.u32 %v1202, 4294901760
  %v1534 = vsub.f32 %v1202, %v1533
  %1535 = vmatpush.msra.mxu0 %v1534
  %v1536 = vand.u32 %v1198, 4294901760
  %v1537 = vsub.f32 %v1198, %v1536
  %1538 = vmatpush.msra.mxu0 %v1537
  %v1539 = vand.u32 %v1225, 4294901760
  %v1540 = vsub.f32 %v1225, %v1539
  %1541 = vmatmul.f32.gmra.mxu0 %v1540
  %v1542 = vpop.f32.mrf.mxu0
  %v1543 = vadd.f32 %v1511, %v1542
  %1544 = vdwg.mxu0
  %1545 = vmatpush.msra.mxu0 0.0
  %1546 = vmatpush.msra.mxu0 0.0
  %1547 = vmatpush.msra.mxu0 0.0
  %1548 = vmatpush.msra.mxu0 0.0
  %1549 = vmatpush.msra.mxu0 0.0
  %1550 = vmatpush.msra.mxu0 0.0
  %1551 = vmatpush.msra.mxu0 0.0
  %1552 = vmatpush.msra.mxu0 0.0
  %1553 = vmatpush.msra.mxu0 0.0
  %1554 = vmatpush.msra.mxu0 0.0
  %1555 = vmatpush.msra.mxu0 0.0
  %v1556 = vand.u32 %v1231, 4294901760
  %1557 = vmatpush.msra.mxu0 %v1556
  %v1558 = vand.u32 %v1210, 4294901760
  %1559 = vmatpush.msra.mxu0 %v1558
  %v1560 = vand.u32 %v1206, 4294901760
  %1561 = vmatpush.msra.mxu0 %v1560
  %v1562 = vand.u32 %v1202, 4294901760
  %1563 = vmatpush.msra.mxu0 %v1562
  %v1564 = vand.u32 %v1198, 4294901760
  %1565 = vmatpush.msra.mxu0 %v1564
  %v1566 = vand.u32 %v1225, 4294901760
  %v1567 = vsub.f32 %v1225, %v1566
  %v1568 = vand.u32 %v1567, 4294901760
  %1569 = vmatmul.f32.gmra.mxu0 %v1568
  %v1570 = vpop.f32.mrf.mxu0
  %v1571 = vadd.f32 %v1543, %v1570
  %1572 = vdwg.mxu0
  %1573 = vmatpush.msra.mxu0 0.0
  %1574 = vmatpush.msra.mxu0 0.0
  %1575 = vmatpush.msra.mxu0 0.0
  %1576 = vmatpush.msra.mxu0 0.0
  %1577 = vmatpush.msra.mxu0 0.0
  %1578 = vmatpush.msra.mxu0 0.0
  %1579 = vmatpush.msra.mxu0 0.0
  %1580 = vmatpush.msra.mxu0 0.0
  %1581 = vmatpush.msra.mxu0 0.0
  %1582 = vmatpush.msra.mxu0 0.0
  %1583 = vmatpush.msra.mxu0 0.0
  %v1584 = vand.u32 %v1231, 4294901760
  %v1585 = vsub.f32 %v1231, %v1584
  %v1586 = vand.u32 %v1585, 4294901760
  %1587 = vmatpush.msra.mxu0 %v1586
  %v1588 = vand.u32 %v1210, 4294901760
  %v1589 = vsub.f32 %v1210, %v1588
  %v1590 = vand.u32 %v1589, 4294901760
  %1591 = vmatpush.msra.mxu0 %v1590
  %v1592 = vand.u32 %v1206, 4294901760
  %v1593 = vsub.f32 %v1206, %v1592
  %v1594 = vand.u32 %v1593, 4294901760
  %1595 = vmatpush.msra.mxu0 %v1594
  %v1596 = vand.u32 %v1202, 4294901760
  %v1597 = vsub.f32 %v1202, %v1596
  %v1598 = vand.u32 %v1597, 4294901760
  %1599 = vmatpush.msra.mxu0 %v1598
  %v1600 = vand.u32 %v1198, 4294901760
  %v1601 = vsub.f32 %v1198, %v1600
  %v1602 = vand.u32 %v1601, 4294901760
  %1603 = vmatpush.msra.mxu0 %v1602
  %v1604 = vand.u32 %v1225, 4294901760
  %1605 = vmatmul.f32.gmra.mxu0 %v1604
  %v1606 = vpop.f32.mrf.mxu0
  %v1607 = vadd.f32 %v1571, %v1606
  %1608 = vdwg.mxu0
  %1609 = vmatpush.msra.mxu0 0.0
  %1610 = vmatpush.msra.mxu0 0.0
  %1611 = vmatpush.msra.mxu0 0.0
  %1612 = vmatpush.msra.mxu0 0.0
  %1613 = vmatpush.msra.mxu0 0.0
  %1614 = vmatpush.msra.mxu0 0.0
  %1615 = vmatpush.msra.mxu0 0.0
  %1616 = vmatpush.msra.mxu0 0.0
  %1617 = vmatpush.msra.mxu0 0.0
  %1618 = vmatpush.msra.mxu0 0.0
  %1619 = vmatpush.msra.mxu0 0.0
  %v1620 = vand.u32 %v1231, 4294901760
  %1621 = vmatpush.msra.mxu0 %v1620
  %v1622 = vand.u32 %v1210, 4294901760
  %1623 = vmatpush.msra.mxu0 %v1622
  %v1624 = vand.u32 %v1206, 4294901760
  %1625 = vmatpush.msra.mxu0 %v1624
  %v1626 = vand.u32 %v1202, 4294901760
  %1627 = vmatpush.msra.mxu0 %v1626
  %v1628 = vand.u32 %v1198, 4294901760
  %1629 = vmatpush.msra.mxu0 %v1628
  %v1630 = vand.u32 %v1225, 4294901760
  %1631 = vmatmul.f32.gmra.mxu0 %v1630
  %v1632 = vpop.f32.mrf.mxu0
  %v1633 = vadd.f32 %v1607, %v1632
  %1634 = vdwg.mxu0
  %1635 = vmatpush.msra.mxu0 0.0
  %1636 = vmatpush.msra.mxu0 0.0
  %1637 = vmatpush.msra.mxu0 0.0
  %1638 = vmatpush.msra.mxu0 0.0
  %1639 = vmatpush.msra.mxu0 0.0
  %1640 = vmatpush.msra.mxu0 0.0
  %1641 = vmatpush.msra.mxu0 0.0
  %1642 = vmatpush.msra.mxu0 0.0
  %1643 = vmatpush.msra.mxu0 0.0
  %1644 = vmatpush.msra.mxu0 0.0
  %1645 = vmatpush.msra.mxu0 0.0
  %v1646 = vand.u32 %v1234, 4294901760
  %1647 = vmatpush.msra.mxu0 %v1646
  %v1648 = vand.u32 %v1211, 4294901760
  %1649 = vmatpush.msra.mxu0 %v1648
  %v1650 = vand.u32 %v1207, 4294901760
  %1651 = vmatpush.msra.mxu0 %v1650
  %v1652 = vand.u32 %v1203, 4294901760
  %1653 = vmatpush.msra.mxu0 %v1652
  %v1654 = vand.u32 %v1199, 4294901760
  %1655 = vmatpush.msra.mxu0 %v1654
  %v1656 = vand.u32 %v1225, 4294901760
  %v1657 = vsub.f32 %v1225, %v1656
  %v1658 = vand.u32 %v1657, 4294901760
  %v1659 = vsub.f32 %v1657, %v1658
  %v1660 = vand.u32 %v1659, 4294901760
  %1661 = vmatmul.f32.gmra.mxu0 %v1660
  %v1662 = vpop.f32.mrf.mxu0
  %v1663 = vadd.f32 %v1221, %v1662
  %1664 = vdwg.mxu0
  %1665 = vmatpush.msra.mxu0 0.0
  %1666 = vmatpush.msra.mxu0 0.0
  %1667 = vmatpush.msra.mxu0 0.0
  %1668 = vmatpush.msra.mxu0 0.0
  %1669 = vmatpush.msra.mxu0 0.0
  %1670 = vmatpush.msra.mxu0 0.0
  %1671 = vmatpush.msra.mxu0 0.0
  %1672 = vmatpush.msra.mxu0 0.0
  %1673 = vmatpush.msra.mxu0 0.0
  %1674 = vmatpush.msra.mxu0 0.0
  %1675 = vmatpush.msra.mxu0 0.0
  %v1676 = vand.u32 %v1234, 4294901760
  %v1677 = vsub.f32 %v1234, %v1676
  %v1678 = vand.u32 %v1677, 4294901760
  %v1679 = vsub.f32 %v1677, %v1678
  %v1680 = vand.u32 %v1679, 4294901760
  %1681 = vmatpush.msra.mxu0 %v1680
  %v1682 = vand.u32 %v1211, 4294901760
  %v1683 = vsub.f32 %v1211, %v1682
  %v1684 = vand.u32 %v1683, 4294901760
  %v1685 = vsub.f32 %v1683, %v1684
  %v1686 = vand.u32 %v1685, 4294901760
  %1687 = vmatpush.msra.mxu0 %v1686
  %v1688 = vand.u32 %v1207, 4294901760
  %v1689 = vsub.f32 %v1207, %v1688
  %v1690 = vand.u32 %v1689, 4294901760
  %v1691 = vsub.f32 %v1689, %v1690
  %v1692 = vand.u32 %v1691, 4294901760
  %1693 = vmatpush.msra.mxu0 %v1692
  %v1694 = vand.u32 %v1203, 4294901760
  %v1695 = vsub.f32 %v1203, %v1694
  %v1696 = vand.u32 %v1695, 4294901760
  %v1697 = vsub.f32 %v1695, %v1696
  %v1698 = vand.u32 %v1697, 4294901760
  %1699 = vmatpush.msra.mxu0 %v1698
  %v1700 = vand.u32 %v1199, 4294901760
  %v1701 = vsub.f32 %v1199, %v1700
  %v1702 = vand.u32 %v1701, 4294901760
  %v1703 = vsub.f32 %v1701, %v1702
  %v1704 = vand.u32 %v1703, 4294901760
  %1705 = vmatpush.msra.mxu0 %v1704
  %v1706 = vand.u32 %v1225, 4294901760
  %1707 = vmatmul.f32.gmra.mxu0 %v1706
  %v1708 = vpop.f32.mrf.mxu0
  %v1709 = vadd.f32 %v1663, %v1708
  %1710 = vdwg.mxu0
  %1711 = vmatpush.msra.mxu0 0.0
  %1712 = vmatpush.msra.mxu0 0.0
  %1713 = vmatpush.msra.mxu0 0.0
  %1714 = vmatpush.msra.mxu0 0.0
  %1715 = vmatpush.msra.mxu0 0.0
  %1716 = vmatpush.msra.mxu0 0.0
  %1717 = vmatpush.msra.mxu0 0.0
  %1718 = vmatpush.msra.mxu0 0.0
  %1719 = vmatpush.msra.mxu0 0.0
  %1720 = vmatpush.msra.mxu0 0.0
  %1721 = vmatpush.msra.mxu0 0.0
  %v1722 = vand.u32 %v1234, 4294901760
  %v1723 = vsub.f32 %v1234, %v1722
  %1724 = vmatpush.msra.mxu0 %v1723
  %v1725 = vand.u32 %v1211, 4294901760
  %v1726 = vsub.f32 %v1211, %v1725
  %1727 = vmatpush.msra.mxu0 %v1726
  %v1728 = vand.u32 %v1207, 4294901760
  %v1729 = vsub.f32 %v1207, %v1728
  %1730 = vmatpush.msra.mxu0 %v1729
  %v1731 = vand.u32 %v1203, 4294901760
  %v1732 = vsub.f32 %v1203, %v1731
  %1733 = vmatpush.msra.mxu0 %v1732
  %v1734 = vand.u32 %v1199, 4294901760
  %v1735 = vsub.f32 %v1199, %v1734
  %1736 = vmatpush.msra.mxu0 %v1735
  %v1737 = vand.u32 %v1225, 4294901760
  %v1738 = vsub.f32 %v1225, %v1737
  %1739 = vmatmul.f32.gmra.mxu0 %v1738
  %v1740 = vpop.f32.mrf.mxu0
  %v1741 = vadd.f32 %v1709, %v1740
  %1742 = vdwg.mxu0
  %1743 = vmatpush.msra.mxu0 0.0
  %1744 = vmatpush.msra.mxu0 0.0
  %1745 = vmatpush.msra.mxu0 0.0
  %1746 = vmatpush.msra.mxu0 0.0
  %1747 = vmatpush.msra.mxu0 0.0
  %1748 = vmatpush.msra.mxu0 0.0
  %1749 = vmatpush.msra.mxu0 0.0
  %1750 = vmatpush.msra.mxu0 0.0
  %1751 = vmatpush.msra.mxu0 0.0
  %1752 = vmatpush.msra.mxu0 0.0
  %1753 = vmatpush.msra.mxu0 0.0
  %v1754 = vand.u32 %v1234, 4294901760
  %1755 = vmatpush.msra.mxu0 %v1754
  %v1756 = vand.u32 %v1211, 4294901760
  %1757 = vmatpush.msra.mxu0 %v1756
  %v1758 = vand.u32 %v1207, 4294901760
  %1759 = vmatpush.msra.mxu0 %v1758
  %v1760 = vand.u32 %v1203, 4294901760
  %1761 = vmatpush.msra.mxu0 %v1760
  %v1762 = vand.u32 %v1199, 4294901760
  %1763 = vmatpush.msra.mxu0 %v1762
  %v1764 = vand.u32 %v1225, 4294901760
  %v1765 = vsub.f32 %v1225, %v1764
  %v1766 = vand.u32 %v1765, 4294901760
  %1767 = vmatmul.f32.gmra.mxu0 %v1766
  %v1768 = vpop.f32.mrf.mxu0
  %v1769 = vadd.f32 %v1741, %v1768
  %1770 = vdwg.mxu0
  %1771 = vmatpush.msra.mxu0 0.0
  %1772 = vmatpush.msra.mxu0 0.0
  %1773 = vmatpush.msra.mxu0 0.0
  %1774 = vmatpush.msra.mxu0 0.0
  %1775 = vmatpush.msra.mxu0 0.0
  %1776 = vmatpush.msra.mxu0 0.0
  %1777 = vmatpush.msra.mxu0 0.0
  %1778 = vmatpush.msra.mxu0 0.0
  %1779 = vmatpush.msra.mxu0 0.0
  %1780 = vmatpush.msra.mxu0 0.0
  %1781 = vmatpush.msra.mxu0 0.0
  %v1782 = vand.u32 %v1234, 4294901760
  %v1783 = vsub.f32 %v1234, %v1782
  %v1784 = vand.u32 %v1783, 4294901760
  %1785 = vmatpush.msra.mxu0 %v1784
  %v1786 = vand.u32 %v1211, 4294901760
  %v1787 = vsub.f32 %v1211, %v1786
  %v1788 = vand.u32 %v1787, 4294901760
  %1789 = vmatpush.msra.mxu0 %v1788
  %v1790 = vand.u32 %v1207, 4294901760
  %v1791 = vsub.f32 %v1207, %v1790
  %v1792 = vand.u32 %v1791, 4294901760
  %1793 = vmatpush.msra.mxu0 %v1792
  %v1794 = vand.u32 %v1203, 4294901760
  %v1795 = vsub.f32 %v1203, %v1794
  %v1796 = vand.u32 %v1795, 4294901760
  %1797 = vmatpush.msra.mxu0 %v1796
  %v1798 = vand.u32 %v1199, 4294901760
  %v1799 = vsub.f32 %v1199, %v1798
  %v1800 = vand.u32 %v1799, 4294901760
  %1801 = vmatpush.msra.mxu0 %v1800
  %v1802 = vand.u32 %v1225, 4294901760
  %1803 = vmatmul.f32.gmra.mxu0 %v1802
  %v1804 = vpop.f32.mrf.mxu0
  %v1805 = vadd.f32 %v1769, %v1804
  %1806 = vdwg.mxu0
  %1807 = vmatpush.msra.mxu0 0.0
  %1808 = vmatpush.msra.mxu0 0.0
  %1809 = vmatpush.msra.mxu0 0.0
  %1810 = vmatpush.msra.mxu0 0.0
  %1811 = vmatpush.msra.mxu0 0.0
  %1812 = vmatpush.msra.mxu0 0.0
  %1813 = vmatpush.msra.mxu0 0.0
  %1814 = vmatpush.msra.mxu0 0.0
  %1815 = vmatpush.msra.mxu0 0.0
  %1816 = vmatpush.msra.mxu0 0.0
  %1817 = vmatpush.msra.mxu0 0.0
  %v1818 = vand.u32 %v1234, 4294901760
  %1819 = vmatpush.msra.mxu0 %v1818
  %v1820 = vand.u32 %v1211, 4294901760
  %1821 = vmatpush.msra.mxu0 %v1820
  %v1822 = vand.u32 %v1207, 4294901760
  %1823 = vmatpush.msra.mxu0 %v1822
  %v1824 = vand.u32 %v1203, 4294901760
  %1825 = vmatpush.msra.mxu0 %v1824
  %v1826 = vand.u32 %v1199, 4294901760
  %1827 = vmatpush.msra.mxu0 %v1826
  %v1828 = vand.u32 %v1225, 4294901760
  %1829 = vmatmul.f32.gmra.mxu0 %v1828
  %v1830 = vpop.f32.mrf.mxu0
  %v1831 = vadd.f32 %v1805, %v1830
  %1832 = vdwg.mxu0
  %1833 = vmatpush.msra.mxu0 0.0
  %1834 = vmatpush.msra.mxu0 0.0
  %1835 = vmatpush.msra.mxu0 0.0
  %1836 = vmatpush.msra.mxu0 0.0
  %1837 = vmatpush.msra.mxu0 0.0
  %1838 = vmatpush.msra.mxu0 0.0
  %1839 = vmatpush.msra.mxu0 0.0
  %1840 = vmatpush.msra.mxu0 0.0
  %1841 = vmatpush.msra.mxu0 0.0
  %1842 = vmatpush.msra.mxu0 0.0
  %1843 = vmatpush.msra.mxu0 0.0
  %v1844 = vand.u32 %v1237, 4294901760
  %1845 = vmatpush.msra.mxu0 %v1844
  %v1846 = vand.u32 %v1212, 4294901760
  %1847 = vmatpush.msra.mxu0 %v1846
  %v1848 = vand.u32 %v1208, 4294901760
  %1849 = vmatpush.msra.mxu0 %v1848
  %v1850 = vand.u32 %v1204, 4294901760
  %1851 = vmatpush.msra.mxu0 %v1850
  %v1852 = vand.u32 %v1200, 4294901760
  %1853 = vmatpush.msra.mxu0 %v1852
  %v1854 = vand.u32 %v1225, 4294901760
  %v1855 = vsub.f32 %v1225, %v1854
  %v1856 = vand.u32 %v1855, 4294901760
  %v1857 = vsub.f32 %v1855, %v1856
  %v1858 = vand.u32 %v1857, 4294901760
  %1859 = vmatmul.f32.gmra.mxu0 %v1858
  %v1860 = vpop.f32.mrf.mxu0
  %v1861 = vadd.f32 %v1221, %v1860
  %1862 = vdwg.mxu0
  %1863 = vmatpush.msra.mxu0 0.0
  %1864 = vmatpush.msra.mxu0 0.0
  %1865 = vmatpush.msra.mxu0 0.0
  %1866 = vmatpush.msra.mxu0 0.0
  %1867 = vmatpush.msra.mxu0 0.0
  %1868 = vmatpush.msra.mxu0 0.0
  %1869 = vmatpush.msra.mxu0 0.0
  %1870 = vmatpush.msra.mxu0 0.0
  %1871 = vmatpush.msra.mxu0 0.0
  %1872 = vmatpush.msra.mxu0 0.0
  %1873 = vmatpush.msra.mxu0 0.0
  %v1874 = vand.u32 %v1237, 4294901760
  %v1875 = vsub.f32 %v1237, %v1874
  %v1876 = vand.u32 %v1875, 4294901760
  %v1877 = vsub.f32 %v1875, %v1876
  %v1878 = vand.u32 %v1877, 4294901760
  %1879 = vmatpush.msra.mxu0 %v1878
  %v1880 = vand.u32 %v1212, 4294901760
  %v1881 = vsub.f32 %v1212, %v1880
  %v1882 = vand.u32 %v1881, 4294901760
  %v1883 = vsub.f32 %v1881, %v1882
  %v1884 = vand.u32 %v1883, 4294901760
  %1885 = vmatpush.msra.mxu0 %v1884
  %v1886 = vand.u32 %v1208, 4294901760
  %v1887 = vsub.f32 %v1208, %v1886
  %v1888 = vand.u32 %v1887, 4294901760
  %v1889 = vsub.f32 %v1887, %v1888
  %v1890 = vand.u32 %v1889, 4294901760
  %1891 = vmatpush.msra.mxu0 %v1890
  %v1892 = vand.u32 %v1204, 4294901760
  %v1893 = vsub.f32 %v1204, %v1892
  %v1894 = vand.u32 %v1893, 4294901760
  %v1895 = vsub.f32 %v1893, %v1894
  %v1896 = vand.u32 %v1895, 4294901760
  %1897 = vmatpush.msra.mxu0 %v1896
  %v1898 = vand.u32 %v1200, 4294901760
  %v1899 = vsub.f32 %v1200, %v1898
  %v1900 = vand.u32 %v1899, 4294901760
  %v1901 = vsub.f32 %v1899, %v1900
  %v1902 = vand.u32 %v1901, 4294901760
  %1903 = vmatpush.msra.mxu0 %v1902
  %v1904 = vand.u32 %v1225, 4294901760
  %1905 = vmatmul.f32.gmra.mxu0 %v1904
  %v1906 = vpop.f32.mrf.mxu0
  %v1907 = vadd.f32 %v1861, %v1906
  %1908 = vdwg.mxu0
  %1909 = vmatpush.msra.mxu0 0.0
  %1910 = vmatpush.msra.mxu0 0.0
  %1911 = vmatpush.msra.mxu0 0.0
  %1912 = vmatpush.msra.mxu0 0.0
  %1913 = vmatpush.msra.mxu0 0.0
  %1914 = vmatpush.msra.mxu0 0.0
  %1915 = vmatpush.msra.mxu0 0.0
  %1916 = vmatpush.msra.mxu0 0.0
  %1917 = vmatpush.msra.mxu0 0.0
  %1918 = vmatpush.msra.mxu0 0.0
  %1919 = vmatpush.msra.mxu0 0.0
  %v1920 = vand.u32 %v1237, 4294901760
  %v1921 = vsub.f32 %v1237, %v1920
  %1922 = vmatpush.msra.mxu0 %v1921
  %v1923 = vand.u32 %v1212, 4294901760
  %v1924 = vsub.f32 %v1212, %v1923
  %1925 = vmatpush.msra.mxu0 %v1924
  %v1926 = vand.u32 %v1208, 4294901760
  %v1927 = vsub.f32 %v1208, %v1926
  %1928 = vmatpush.msra.mxu0 %v1927
  %v1929 = vand.u32 %v1204, 4294901760
  %v1930 = vsub.f32 %v1204, %v1929
  %1931 = vmatpush.msra.mxu0 %v1930
  %v1932 = vand.u32 %v1200, 4294901760
  %v1933 = vsub.f32 %v1200, %v1932
  %1934 = vmatpush.msra.mxu0 %v1933
  %v1935 = vand.u32 %v1225, 4294901760
  %v1936 = vsub.f32 %v1225, %v1935
  %1937 = vmatmul.f32.gmra.mxu0 %v1936
  %v1938 = vpop.f32.mrf.mxu0
  %v1939 = vadd.f32 %v1907, %v1938
  %1940 = vdwg.mxu0
  %1941 = vmatpush.msra.mxu0 0.0
  %1942 = vmatpush.msra.mxu0 0.0
  %1943 = vmatpush.msra.mxu0 0.0
  %1944 = vmatpush.msra.mxu0 0.0
  %1945 = vmatpush.msra.mxu0 0.0
  %1946 = vmatpush.msra.mxu0 0.0
  %1947 = vmatpush.msra.mxu0 0.0
  %1948 = vmatpush.msra.mxu0 0.0
  %1949 = vmatpush.msra.mxu0 0.0
  %1950 = vmatpush.msra.mxu0 0.0
  %1951 = vmatpush.msra.mxu0 0.0
  %v1952 = vand.u32 %v1237, 4294901760
  %1953 = vmatpush.msra.mxu0 %v1952
  %v1954 = vand.u32 %v1212, 4294901760
  %1955 = vmatpush.msra.mxu0 %v1954
  %v1956 = vand.u32 %v1208, 4294901760
  %1957 = vmatpush.msra.mxu0 %v1956
  %v1958 = vand.u32 %v1204, 4294901760
  %1959 = vmatpush.msra.mxu0 %v1958
  %v1960 = vand.u32 %v1200, 4294901760
  %1961 = vmatpush.msra.mxu0 %v1960
  %v1962 = vand.u32 %v1225, 4294901760
  %v1963 = vsub.f32 %v1225, %v1962
  %v1964 = vand.u32 %v1963, 4294901760
  %1965 = vmatmul.f32.gmra.mxu0 %v1964
  %v1966 = vpop.f32.mrf.mxu0
  %v1967 = vadd.f32 %v1939, %v1966
  %1968 = vdwg.mxu0
  %1969 = vmatpush.msra.mxu0 0.0
  %1970 = vmatpush.msra.mxu0 0.0
  %1971 = vmatpush.msra.mxu0 0.0
  %1972 = vmatpush.msra.mxu0 0.0
  %1973 = vmatpush.msra.mxu0 0.0
  %1974 = vmatpush.msra.mxu0 0.0
  %1975 = vmatpush.msra.mxu0 0.0
  %1976 = vmatpush.msra.mxu0 0.0
  %1977 = vmatpush.msra.mxu0 0.0
  %1978 = vmatpush.msra.mxu0 0.0
  %1979 = vmatpush.msra.mxu0 0.0
  %v1980 = vand.u32 %v1237, 4294901760
  %v1981 = vsub.f32 %v1237, %v1980
  %v1982 = vand.u32 %v1981, 4294901760
  %1983 = vmatpush.msra.mxu0 %v1982
  %v1984 = vand.u32 %v1212, 4294901760
  %v1985 = vsub.f32 %v1212, %v1984
  %v1986 = vand.u32 %v1985, 4294901760
  %1987 = vmatpush.msra.mxu0 %v1986
  %v1988 = vand.u32 %v1208, 4294901760
  %v1989 = vsub.f32 %v1208, %v1988
  %v1990 = vand.u32 %v1989, 4294901760
  %1991 = vmatpush.msra.mxu0 %v1990
  %v1992 = vand.u32 %v1204, 4294901760
  %v1993 = vsub.f32 %v1204, %v1992
  %v1994 = vand.u32 %v1993, 4294901760
  %1995 = vmatpush.msra.mxu0 %v1994
  %v1996 = vand.u32 %v1200, 4294901760
  %v1997 = vsub.f32 %v1200, %v1996
  %v1998 = vand.u32 %v1997, 4294901760
  %1999 = vmatpush.msra.mxu0 %v1998
  %v2000 = vand.u32 %v1225, 4294901760
  %2001 = vmatmul.f32.gmra.mxu0 %v2000
  %v2002 = vpop.f32.mrf.mxu0
  %v2003 = vadd.f32 %v1967, %v2002
  %2004 = vdwg.mxu0
  %2005 = vmatpush.msra.mxu0 0.0
  %2006 = vmatpush.msra.mxu0 0.0
  %2007 = vmatpush.msra.mxu0 0.0
  %2008 = vmatpush.msra.mxu0 0.0
  %2009 = vmatpush.msra.mxu0 0.0
  %2010 = vmatpush.msra.mxu0 0.0
  %2011 = vmatpush.msra.mxu0 0.0
  %2012 = vmatpush.msra.mxu0 0.0
  %2013 = vmatpush.msra.mxu0 0.0
  %2014 = vmatpush.msra.mxu0 0.0
  %2015 = vmatpush.msra.mxu0 0.0
  %v2016 = vand.u32 %v1237, 4294901760
  %2017 = vmatpush.msra.mxu0 %v2016
  %v2018 = vand.u32 %v1212, 4294901760
  %2019 = vmatpush.msra.mxu0 %v2018
  %v2020 = vand.u32 %v1208, 4294901760
  %2021 = vmatpush.msra.mxu0 %v2020
  %v2022 = vand.u32 %v1204, 4294901760
  %2023 = vmatpush.msra.mxu0 %v2022
  %v2024 = vand.u32 %v1200, 4294901760
  %2025 = vmatpush.msra.mxu0 %v2024
  %v2026 = vand.u32 %v1225, 4294901760
  %2027 = vmatmul.f32.gmra.mxu0 %v2026
  %v2028 = vpop.f32.mrf.mxu0
  %v2029 = vadd.f32 %v2003, %v2028
  %2030 = vdwg.mxu0
  %v2031 = vmax.f32 %v1435, 0.0
  %v2032 = vmax.f32 %v1633, 0.0
  %v2033 = vmax.f32 %v1831, 0.0
  %v2034 = vmax.f32 %v2029, 0.0
  %2035 = vst [vmem:[#allocation5] sm:$0xf] %v2031
  %2036 = vst [vmem:[#allocation5 + $0x8] sm:$0xf] %v2032
  %2037 = vst [vmem:[#allocation5 + $0x10] sm:$0xf] %v2033
  %2038 = vst [vmem:[#allocation5 + $0x18] sm:$0xf] %v2034
  %s2039 = scalar_lea.vmem [#allocation1], 1
  %2040 = vst [vmem:[%s2039] ss:$2 sm:$0xff] %v34
  %s2041 = scalar_lea.vmem [#allocation1], 17
  %2042 = vst [vmem:[%s2041] ss:$2 sm:$0xff] %v35
  %v2043 = vld.sshfl [vmem:[#allocation1] sm:$0xff pattern:$0x75316420]
  %v2044 = vld.sshfl [vmem:[#allocation1 + $0x8] sm:$0xff pattern:$0x75316420]
  %v2045 = vld.sshfl [vmem:[#allocation1 + $0x10] sm:$0xff pattern:$0x75316420]
  %v2046 = vld.sshfl [vmem:[#allocation1 + $0x18] sm:$0xff pattern:$0x75316420]
  %2051 = vst [vmem:[#allocation5] sm:$0xf0] %v2043
  %2052 = vst [vmem:[#allocation5 + $0x8] sm:$0xf0] %v2044
  %2053 = vst [vmem:[#allocation5 + $0x10] sm:$0xf0] %v2045
  %2054 = vst [vmem:[#allocation5 + $0x18] sm:$0xf0] %v2046
  %v2055 = vld [vmem:[%s5] sm:$0xff]
  %v2056 = vld [vmem:[%s5 + $0x8] sm:$0xff]
  %v2057 = vld [vmem:[#allocation5] sm:$0xff]
  %v2058 = vld [vmem:[#allocation5 + $0x8] sm:$0xff]
  %v2059 = vld [vmem:[#allocation5 + $0x10] sm:$0xff]
  %v2060 = vld [vmem:[#allocation5 + $0x18] sm:$0xff]
  %v2061 = vld [vmem:[%s6] sm:$0xff]
  %v2062 = vld [vmem:[%s6 + $0x8] sm:$0xff]
  %2064 = vset.pattern.permute.xlu0 0
  %2065 = vperm.xlu0 %2064, %v2061
  %v2066 = vpop.permute.xlu0 %2065
  %2069 = vset.pattern.permute.xlu0 0
  %2070 = vperm.xlu0 %2069, %v2062
  %v2071 = vpop.permute.xlu0 %2070
  %vm2073 = vcmask 64512
  %v2075 = vsel %vm2073, %v2055, 0
  %v2078 = vsel %vm2073, %v2056, 0
  %2080 = vmatpush.msra.mxu0 0.0
  %2081 = vmatpush.msra.mxu0 0.0
  %2082 = vmatpush.msra.mxu0 0.0
  %2083 = vmatpush.msra.mxu0 0.0
  %2084 = vmatpush.msra.mxu0 0.0
  %2085 = vmatpush.msra.mxu0 0.0
  %2086 = vmatpush.msra.mxu0 0.0
  %2087 = vmatpush.msra.mxu0 0.0
  %2088 = vmatpush.msra.mxu0 0.0
  %2089 = vmatpush.msra.mxu0 0.0
  %2090 = vmatpush.msra.mxu0 0.0
  %2091 = vmatpush.msra.mxu0 0.0
  %2092 = vmatpush.msra.mxu0 0.0
  %2093 = vmatpush.msra.mxu0 0.0
  %2094 = vmatpush.msra.mxu0 0.0
  %v2095 = vand.u32 %v2057, 4294901760
  %2096 = vmatpush.msra.mxu0 %v2095
  %v2097 = vand.u32 %v2075, 4294901760
  %v2098 = vsub.f32 %v2075, %v2097
  %v2099 = vand.u32 %v2098, 4294901760
  %v2100 = vsub.f32 %v2098, %v2099
  %v2101 = vand.u32 %v2100, 4294901760
  %2102 = vmatmul.f32.gmra.mxu0 %v2101
  %v2103 = vpop.f32.mrf.mxu0
  %v2104 = vadd.f32 %v2066, %v2103
  %v2105 = vand.u32 %v2078, 4294901760
  %v2106 = vsub.f32 %v2078, %v2105
  %v2107 = vand.u32 %v2106, 4294901760
  %v2108 = vsub.f32 %v2106, %v2107
  %v2109 = vand.u32 %v2108, 4294901760
  %2110 = vmatmul.f32.gmra.mxu0 %v2109
  %v2111 = vpop.f32.mrf.mxu0
  %v2112 = vadd.f32 %v2071, %v2111
  %2113 = vdwg.mxu0
  %2114 = vmatpush.msra.mxu0 0.0
  %2115 = vmatpush.msra.mxu0 0.0
  %2116 = vmatpush.msra.mxu0 0.0
  %2117 = vmatpush.msra.mxu0 0.0
  %2118 = vmatpush.msra.mxu0 0.0
  %2119 = vmatpush.msra.mxu0 0.0
  %2120 = vmatpush.msra.mxu0 0.0
  %2121 = vmatpush.msra.mxu0 0.0
  %2122 = vmatpush.msra.mxu0 0.0
  %2123 = vmatpush.msra.mxu0 0.0
  %2124 = vmatpush.msra.mxu0 0.0
  %2125 = vmatpush.msra.mxu0 0.0
  %2126 = vmatpush.msra.mxu0 0.0
  %2127 = vmatpush.msra.mxu0 0.0
  %2128 = vmatpush.msra.mxu0 0.0
  %v2129 = vand.u32 %v2057, 4294901760
  %v2130 = vsub.f32 %v2057, %v2129
  %v2131 = vand.u32 %v2130, 4294901760
  %v2132 = vsub.f32 %v2130, %v2131
  %v2133 = vand.u32 %v2132, 4294901760
  %2134 = vmatpush.msra.mxu0 %v2133
  %v2135 = vand.u32 %v2075, 4294901760
  %2136 = vmatmul.f32.gmra.mxu0 %v2135
  %v2137 = vpop.f32.mrf.mxu0
  %v2138 = vadd.f32 %v2104, %v2137
  %v2139 = vand.u32 %v2078, 4294901760
  %2140 = vmatmul.f32.gmra.mxu0 %v2139
  %v2141 = vpop.f32.mrf.mxu0
  %v2142 = vadd.f32 %v2112, %v2141
  %2143 = vdwg.mxu0
  %2144 = vmatpush.msra.mxu0 0.0
  %2145 = vmatpush.msra.mxu0 0.0
  %2146 = vmatpush.msra.mxu0 0.0
  %2147 = vmatpush.msra.mxu0 0.0
  %2148 = vmatpush.msra.mxu0 0.0
  %2149 = vmatpush.msra.mxu0 0.0
  %2150 = vmatpush.msra.mxu0 0.0
  %2151 = vmatpush.msra.mxu0 0.0
  %2152 = vmatpush.msra.mxu0 0.0
  %2153 = vmatpush.msra.mxu0 0.0
  %2154 = vmatpush.msra.mxu0 0.0
  %2155 = vmatpush.msra.mxu0 0.0
  %2156 = vmatpush.msra.mxu0 0.0
  %2157 = vmatpush.msra.mxu0 0.0
  %2158 = vmatpush.msra.mxu0 0.0
  %v2159 = vand.u32 %v2057, 4294901760
  %v2160 = vsub.f32 %v2057, %v2159
  %2161 = vmatpush.msra.mxu0 %v2160
  %v2162 = vand.u32 %v2075, 4294901760
  %v2163 = vsub.f32 %v2075, %v2162
  %2164 = vmatmul.f32.gmra.mxu0 %v2163
  %v2165 = vpop.f32.mrf.mxu0
  %v2166 = vadd.f32 %v2138, %v2165
  %v2167 = vand.u32 %v2078, 4294901760
  %v2168 = vsub.f32 %v2078, %v2167
  %2169 = vmatmul.f32.gmra.mxu0 %v2168
  %v2170 = vpop.f32.mrf.mxu0
  %v2171 = vadd.f32 %v2142, %v2170
  %2172 = vdwg.mxu0
  %2173 = vmatpush.msra.mxu0 0.0
  %2174 = vmatpush.msra.mxu0 0.0
  %2175 = vmatpush.msra.mxu0 0.0
  %2176 = vmatpush.msra.mxu0 0.0
  %2177 = vmatpush.msra.mxu0 0.0
  %2178 = vmatpush.msra.mxu0 0.0
  %2179 = vmatpush.msra.mxu0 0.0
  %2180 = vmatpush.msra.mxu0 0.0
  %2181 = vmatpush.msra.mxu0 0.0
  %2182 = vmatpush.msra.mxu0 0.0
  %2183 = vmatpush.msra.mxu0 0.0
  %2184 = vmatpush.msra.mxu0 0.0
  %2185 = vmatpush.msra.mxu0 0.0
  %2186 = vmatpush.msra.mxu0 0.0
  %2187 = vmatpush.msra.mxu0 0.0
  %v2188 = vand.u32 %v2057, 4294901760
  %2189 = vmatpush.msra.mxu0 %v2188
  %v2190 = vand.u32 %v2075, 4294901760
  %v2191 = vsub.f32 %v2075, %v2190
  %v2192 = vand.u32 %v2191, 4294901760
  %2193 = vmatmul.f32.gmra.mxu0 %v2192
  %v2194 = vpop.f32.mrf.mxu0
  %v2195 = vadd.f32 %v2166, %v2194
  %v2196 = vand.u32 %v2078, 4294901760
  %v2197 = vsub.f32 %v2078, %v2196
  %v2198 = vand.u32 %v2197, 4294901760
  %2199 = vmatmul.f32.gmra.mxu0 %v2198
  %v2200 = vpop.f32.mrf.mxu0
  %v2201 = vadd.f32 %v2171, %v2200
  %2202 = vdwg.mxu0
  %2203 = vmatpush.msra.mxu0 0.0
  %2204 = vmatpush.msra.mxu0 0.0
  %2205 = vmatpush.msra.mxu0 0.0
  %2206 = vmatpush.msra.mxu0 0.0
  %2207 = vmatpush.msra.mxu0 0.0
  %2208 = vmatpush.msra.mxu0 0.0
  %2209 = vmatpush.msra.mxu0 0.0
  %2210 = vmatpush.msra.mxu0 0.0
  %2211 = vmatpush.msra.mxu0 0.0
  %2212 = vmatpush.msra.mxu0 0.0
  %2213 = vmatpush.msra.mxu0 0.0
  %2214 = vmatpush.msra.mxu0 0.0
  %2215 = vmatpush.msra.mxu0 0.0
  %2216 = vmatpush.msra.mxu0 0.0
  %2217 = vmatpush.msra.mxu0 0.0
  %v2218 = vand.u32 %v2057, 4294901760
  %v2219 = vsub.f32 %v2057, %v2218
  %v2220 = vand.u32 %v2219, 4294901760
  %2221 = vmatpush.msra.mxu0 %v2220
  %v2222 = vand.u32 %v2075, 4294901760
  %2223 = vmatmul.f32.gmra.mxu0 %v2222
  %v2224 = vpop.f32.mrf.mxu0
  %v2225 = vadd.f32 %v2195, %v2224
  %v2226 = vand.u32 %v2078, 4294901760
  %2227 = vmatmul.f32.gmra.mxu0 %v2226
  %v2228 = vpop.f32.mrf.mxu0
  %v2229 = vadd.f32 %v2201, %v2228
  %2230 = vdwg.mxu0
  %2231 = vmatpush.msra.mxu0 0.0
  %2232 = vmatpush.msra.mxu0 0.0
  %2233 = vmatpush.msra.mxu0 0.0
  %2234 = vmatpush.msra.mxu0 0.0
  %2235 = vmatpush.msra.mxu0 0.0
  %2236 = vmatpush.msra.mxu0 0.0
  %2237 = vmatpush.msra.mxu0 0.0
  %2238 = vmatpush.msra.mxu0 0.0
  %2239 = vmatpush.msra.mxu0 0.0
  %2240 = vmatpush.msra.mxu0 0.0
  %2241 = vmatpush.msra.mxu0 0.0
  %2242 = vmatpush.msra.mxu0 0.0
  %2243 = vmatpush.msra.mxu0 0.0
  %2244 = vmatpush.msra.mxu0 0.0
  %2245 = vmatpush.msra.mxu0 0.0
  %v2246 = vand.u32 %v2057, 4294901760
  %2247 = vmatpush.msra.mxu0 %v2246
  %v2248 = vand.u32 %v2075, 4294901760
  %2249 = vmatmul.f32.gmra.mxu0 %v2248
  %v2250 = vpop.f32.mrf.mxu0
  %v2251 = vadd.f32 %v2225, %v2250
  %v2252 = vand.u32 %v2078, 4294901760
  %2253 = vmatmul.f32.gmra.mxu0 %v2252
  %v2254 = vpop.f32.mrf.mxu0
  %v2255 = vadd.f32 %v2229, %v2254
  %2256 = vdwg.mxu0
  %2257 = vmatpush.msra.mxu0 0.0
  %2258 = vmatpush.msra.mxu0 0.0
  %2259 = vmatpush.msra.mxu0 0.0
  %2260 = vmatpush.msra.mxu0 0.0
  %2261 = vmatpush.msra.mxu0 0.0
  %2262 = vmatpush.msra.mxu0 0.0
  %2263 = vmatpush.msra.mxu0 0.0
  %2264 = vmatpush.msra.mxu0 0.0
  %2265 = vmatpush.msra.mxu0 0.0
  %2266 = vmatpush.msra.mxu0 0.0
  %2267 = vmatpush.msra.mxu0 0.0
  %2268 = vmatpush.msra.mxu0 0.0
  %2269 = vmatpush.msra.mxu0 0.0
  %2270 = vmatpush.msra.mxu0 0.0
  %2271 = vmatpush.msra.mxu0 0.0
  %v2272 = vand.u32 %v2058, 4294901760
  %2273 = vmatpush.msra.mxu0 %v2272
  %v2274 = vand.u32 %v2075, 4294901760
  %v2275 = vsub.f32 %v2075, %v2274
  %v2276 = vand.u32 %v2275, 4294901760
  %v2277 = vsub.f32 %v2275, %v2276
  %v2278 = vand.u32 %v2277, 4294901760
  %2279 = vmatmul.f32.gmra.mxu0 %v2278
  %v2280 = vpop.f32.mrf.mxu0
  %v2281 = vadd.f32 %v2066, %v2280
  %v2282 = vand.u32 %v2078, 4294901760
  %v2283 = vsub.f32 %v2078, %v2282
  %v2284 = vand.u32 %v2283, 4294901760
  %v2285 = vsub.f32 %v2283, %v2284
  %v2286 = vand.u32 %v2285, 4294901760
  %2287 = vmatmul.f32.gmra.mxu0 %v2286
  %v2288 = vpop.f32.mrf.mxu0
  %v2289 = vadd.f32 %v2071, %v2288
  %2290 = vdwg.mxu0
  %2291 = vmatpush.msra.mxu0 0.0
  %2292 = vmatpush.msra.mxu0 0.0
  %2293 = vmatpush.msra.mxu0 0.0
  %2294 = vmatpush.msra.mxu0 0.0
  %2295 = vmatpush.msra.mxu0 0.0
  %2296 = vmatpush.msra.mxu0 0.0
  %2297 = vmatpush.msra.mxu0 0.0
  %2298 = vmatpush.msra.mxu0 0.0
  %2299 = vmatpush.msra.mxu0 0.0
  %2300 = vmatpush.msra.mxu0 0.0
  %2301 = vmatpush.msra.mxu0 0.0
  %2302 = vmatpush.msra.mxu0 0.0
  %2303 = vmatpush.msra.mxu0 0.0
  %2304 = vmatpush.msra.mxu0 0.0
  %2305 = vmatpush.msra.mxu0 0.0
  %v2306 = vand.u32 %v2058, 4294901760
  %v2307 = vsub.f32 %v2058, %v2306
  %v2308 = vand.u32 %v2307, 4294901760
  %v2309 = vsub.f32 %v2307, %v2308
  %v2310 = vand.u32 %v2309, 4294901760
  %2311 = vmatpush.msra.mxu0 %v2310
  %v2312 = vand.u32 %v2075, 4294901760
  %2313 = vmatmul.f32.gmra.mxu0 %v2312
  %v2314 = vpop.f32.mrf.mxu0
  %v2315 = vadd.f32 %v2281, %v2314
  %v2316 = vand.u32 %v2078, 4294901760
  %2317 = vmatmul.f32.gmra.mxu0 %v2316
  %v2318 = vpop.f32.mrf.mxu0
  %v2319 = vadd.f32 %v2289, %v2318
  %2320 = vdwg.mxu0
  %2321 = vmatpush.msra.mxu0 0.0
  %2322 = vmatpush.msra.mxu0 0.0
  %2323 = vmatpush.msra.mxu0 0.0
  %2324 = vmatpush.msra.mxu0 0.0
  %2325 = vmatpush.msra.mxu0 0.0
  %2326 = vmatpush.msra.mxu0 0.0
  %2327 = vmatpush.msra.mxu0 0.0
  %2328 = vmatpush.msra.mxu0 0.0
  %2329 = vmatpush.msra.mxu0 0.0
  %2330 = vmatpush.msra.mxu0 0.0
  %2331 = vmatpush.msra.mxu0 0.0
  %2332 = vmatpush.msra.mxu0 0.0
  %2333 = vmatpush.msra.mxu0 0.0
  %2334 = vmatpush.msra.mxu0 0.0
  %2335 = vmatpush.msra.mxu0 0.0
  %v2336 = vand.u32 %v2058, 4294901760
  %v2337 = vsub.f32 %v2058, %v2336
  %2338 = vmatpush.msra.mxu0 %v2337
  %v2339 = vand.u32 %v2075, 4294901760
  %v2340 = vsub.f32 %v2075, %v2339
  %2341 = vmatmul.f32.gmra.mxu0 %v2340
  %v2342 = vpop.f32.mrf.mxu0
  %v2343 = vadd.f32 %v2315, %v2342
  %v2344 = vand.u32 %v2078, 4294901760
  %v2345 = vsub.f32 %v2078, %v2344
  %2346 = vmatmul.f32.gmra.mxu0 %v2345
  %v2347 = vpop.f32.mrf.mxu0
  %v2348 = vadd.f32 %v2319, %v2347
  %2349 = vdwg.mxu0
  %2350 = vmatpush.msra.mxu0 0.0
  %2351 = vmatpush.msra.mxu0 0.0
  %2352 = vmatpush.msra.mxu0 0.0
  %2353 = vmatpush.msra.mxu0 0.0
  %2354 = vmatpush.msra.mxu0 0.0
  %2355 = vmatpush.msra.mxu0 0.0
  %2356 = vmatpush.msra.mxu0 0.0
  %2357 = vmatpush.msra.mxu0 0.0
  %2358 = vmatpush.msra.mxu0 0.0
  %2359 = vmatpush.msra.mxu0 0.0
  %2360 = vmatpush.msra.mxu0 0.0
  %2361 = vmatpush.msra.mxu0 0.0
  %2362 = vmatpush.msra.mxu0 0.0
  %2363 = vmatpush.msra.mxu0 0.0
  %2364 = vmatpush.msra.mxu0 0.0
  %v2365 = vand.u32 %v2058, 4294901760
  %2366 = vmatpush.msra.mxu0 %v2365
  %v2367 = vand.u32 %v2075, 4294901760
  %v2368 = vsub.f32 %v2075, %v2367
  %v2369 = vand.u32 %v2368, 4294901760
  %2370 = vmatmul.f32.gmra.mxu0 %v2369
  %v2371 = vpop.f32.mrf.mxu0
  %v2372 = vadd.f32 %v2343, %v2371
  %v2373 = vand.u32 %v2078, 4294901760
  %v2374 = vsub.f32 %v2078, %v2373
  %v2375 = vand.u32 %v2374, 4294901760
  %2376 = vmatmul.f32.gmra.mxu0 %v2375
  %v2377 = vpop.f32.mrf.mxu0
  %v2378 = vadd.f32 %v2348, %v2377
  %2379 = vdwg.mxu0
  %2380 = vmatpush.msra.mxu0 0.0
  %2381 = vmatpush.msra.mxu0 0.0
  %2382 = vmatpush.msra.mxu0 0.0
  %2383 = vmatpush.msra.mxu0 0.0
  %2384 = vmatpush.msra.mxu0 0.0
  %2385 = vmatpush.msra.mxu0 0.0
  %2386 = vmatpush.msra.mxu0 0.0
  %2387 = vmatpush.msra.mxu0 0.0
  %2388 = vmatpush.msra.mxu0 0.0
  %2389 = vmatpush.msra.mxu0 0.0
  %2390 = vmatpush.msra.mxu0 0.0
  %2391 = vmatpush.msra.mxu0 0.0
  %2392 = vmatpush.msra.mxu0 0.0
  %2393 = vmatpush.msra.mxu0 0.0
  %2394 = vmatpush.msra.mxu0 0.0
  %v2395 = vand.u32 %v2058, 4294901760
  %v2396 = vsub.f32 %v2058, %v2395
  %v2397 = vand.u32 %v2396, 4294901760
  %2398 = vmatpush.msra.mxu0 %v2397
  %v2399 = vand.u32 %v2075, 4294901760
  %2400 = vmatmul.f32.gmra.mxu0 %v2399
  %v2401 = vpop.f32.mrf.mxu0
  %v2402 = vadd.f32 %v2372, %v2401
  %v2403 = vand.u32 %v2078, 4294901760
  %2404 = vmatmul.f32.gmra.mxu0 %v2403
  %v2405 = vpop.f32.mrf.mxu0
  %v2406 = vadd.f32 %v2378, %v2405
  %2407 = vdwg.mxu0
  %2408 = vmatpush.msra.mxu0 0.0
  %2409 = vmatpush.msra.mxu0 0.0
  %2410 = vmatpush.msra.mxu0 0.0
  %2411 = vmatpush.msra.mxu0 0.0
  %2412 = vmatpush.msra.mxu0 0.0
  %2413 = vmatpush.msra.mxu0 0.0
  %2414 = vmatpush.msra.mxu0 0.0
  %2415 = vmatpush.msra.mxu0 0.0
  %2416 = vmatpush.msra.mxu0 0.0
  %2417 = vmatpush.msra.mxu0 0.0
  %2418 = vmatpush.msra.mxu0 0.0
  %2419 = vmatpush.msra.mxu0 0.0
  %2420 = vmatpush.msra.mxu0 0.0
  %2421 = vmatpush.msra.mxu0 0.0
  %2422 = vmatpush.msra.mxu0 0.0
  %v2423 = vand.u32 %v2058, 4294901760
  %2424 = vmatpush.msra.mxu0 %v2423
  %v2425 = vand.u32 %v2075, 4294901760
  %2426 = vmatmul.f32.gmra.mxu0 %v2425
  %v2427 = vpop.f32.mrf.mxu0
  %v2428 = vadd.f32 %v2402, %v2427
  %v2429 = vand.u32 %v2078, 4294901760
  %2430 = vmatmul.f32.gmra.mxu0 %v2429
  %v2431 = vpop.f32.mrf.mxu0
  %v2432 = vadd.f32 %v2406, %v2431
  %2433 = vdwg.mxu0
  %2434 = vmatpush.msra.mxu0 0.0
  %2435 = vmatpush.msra.mxu0 0.0
  %2436 = vmatpush.msra.mxu0 0.0
  %2437 = vmatpush.msra.mxu0 0.0
  %2438 = vmatpush.msra.mxu0 0.0
  %2439 = vmatpush.msra.mxu0 0.0
  %2440 = vmatpush.msra.mxu0 0.0
  %2441 = vmatpush.msra.mxu0 0.0
  %2442 = vmatpush.msra.mxu0 0.0
  %2443 = vmatpush.msra.mxu0 0.0
  %2444 = vmatpush.msra.mxu0 0.0
  %2445 = vmatpush.msra.mxu0 0.0
  %2446 = vmatpush.msra.mxu0 0.0
  %2447 = vmatpush.msra.mxu0 0.0
  %2448 = vmatpush.msra.mxu0 0.0
  %v2449 = vand.u32 %v2059, 4294901760
  %2450 = vmatpush.msra.mxu0 %v2449
  %v2451 = vand.u32 %v2075, 4294901760
  %v2452 = vsub.f32 %v2075, %v2451
  %v2453 = vand.u32 %v2452, 4294901760
  %v2454 = vsub.f32 %v2452, %v2453
  %v2455 = vand.u32 %v2454, 4294901760
  %2456 = vmatmul.f32.gmra.mxu0 %v2455
  %v2457 = vpop.f32.mrf.mxu0
  %v2458 = vadd.f32 %v2066, %v2457
  %v2459 = vand.u32 %v2078, 4294901760
  %v2460 = vsub.f32 %v2078, %v2459
  %v2461 = vand.u32 %v2460, 4294901760
  %v2462 = vsub.f32 %v2460, %v2461
  %v2463 = vand.u32 %v2462, 4294901760
  %2464 = vmatmul.f32.gmra.mxu0 %v2463
  %v2465 = vpop.f32.mrf.mxu0
  %v2466 = vadd.f32 %v2071, %v2465
  %2467 = vdwg.mxu0
  %2468 = vmatpush.msra.mxu0 0.0
  %2469 = vmatpush.msra.mxu0 0.0
  %2470 = vmatpush.msra.mxu0 0.0
  %2471 = vmatpush.msra.mxu0 0.0
  %2472 = vmatpush.msra.mxu0 0.0
  %2473 = vmatpush.msra.mxu0 0.0
  %2474 = vmatpush.msra.mxu0 0.0
  %2475 = vmatpush.msra.mxu0 0.0
  %2476 = vmatpush.msra.mxu0 0.0
  %2477 = vmatpush.msra.mxu0 0.0
  %2478 = vmatpush.msra.mxu0 0.0
  %2479 = vmatpush.msra.mxu0 0.0
  %2480 = vmatpush.msra.mxu0 0.0
  %2481 = vmatpush.msra.mxu0 0.0
  %2482 = vmatpush.msra.mxu0 0.0
  %v2483 = vand.u32 %v2059, 4294901760
  %v2484 = vsub.f32 %v2059, %v2483
  %v2485 = vand.u32 %v2484, 4294901760
  %v2486 = vsub.f32 %v2484, %v2485
  %v2487 = vand.u32 %v2486, 4294901760
  %2488 = vmatpush.msra.mxu0 %v2487
  %v2489 = vand.u32 %v2075, 4294901760
  %2490 = vmatmul.f32.gmra.mxu0 %v2489
  %v2491 = vpop.f32.mrf.mxu0
  %v2492 = vadd.f32 %v2458, %v2491
  %v2493 = vand.u32 %v2078, 4294901760
  %2494 = vmatmul.f32.gmra.mxu0 %v2493
  %v2495 = vpop.f32.mrf.mxu0
  %v2496 = vadd.f32 %v2466, %v2495
  %2497 = vdwg.mxu0
  %2498 = vmatpush.msra.mxu0 0.0
  %2499 = vmatpush.msra.mxu0 0.0
  %2500 = vmatpush.msra.mxu0 0.0
  %2501 = vmatpush.msra.mxu0 0.0
  %2502 = vmatpush.msra.mxu0 0.0
  %2503 = vmatpush.msra.mxu0 0.0
  %2504 = vmatpush.msra.mxu0 0.0
  %2505 = vmatpush.msra.mxu0 0.0
  %2506 = vmatpush.msra.mxu0 0.0
  %2507 = vmatpush.msra.mxu0 0.0
  %2508 = vmatpush.msra.mxu0 0.0
  %2509 = vmatpush.msra.mxu0 0.0
  %2510 = vmatpush.msra.mxu0 0.0
  %2511 = vmatpush.msra.mxu0 0.0
  %2512 = vmatpush.msra.mxu0 0.0
  %v2513 = vand.u32 %v2059, 4294901760
  %v2514 = vsub.f32 %v2059, %v2513
  %2515 = vmatpush.msra.mxu0 %v2514
  %v2516 = vand.u32 %v2075, 4294901760
  %v2517 = vsub.f32 %v2075, %v2516
  %2518 = vmatmul.f32.gmra.mxu0 %v2517
  %v2519 = vpop.f32.mrf.mxu0
  %v2520 = vadd.f32 %v2492, %v2519
  %v2521 = vand.u32 %v2078, 4294901760
  %v2522 = vsub.f32 %v2078, %v2521
  %2523 = vmatmul.f32.gmra.mxu0 %v2522
  %v2524 = vpop.f32.mrf.mxu0
  %v2525 = vadd.f32 %v2496, %v2524
  %2526 = vdwg.mxu0
  %2527 = vmatpush.msra.mxu0 0.0
  %2528 = vmatpush.msra.mxu0 0.0
  %2529 = vmatpush.msra.mxu0 0.0
  %2530 = vmatpush.msra.mxu0 0.0
  %2531 = vmatpush.msra.mxu0 0.0
  %2532 = vmatpush.msra.mxu0 0.0
  %2533 = vmatpush.msra.mxu0 0.0
  %2534 = vmatpush.msra.mxu0 0.0
  %2535 = vmatpush.msra.mxu0 0.0
  %2536 = vmatpush.msra.mxu0 0.0
  %2537 = vmatpush.msra.mxu0 0.0
  %2538 = vmatpush.msra.mxu0 0.0
  %2539 = vmatpush.msra.mxu0 0.0
  %2540 = vmatpush.msra.mxu0 0.0
  %2541 = vmatpush.msra.mxu0 0.0
  %v2542 = vand.u32 %v2059, 4294901760
  %2543 = vmatpush.msra.mxu0 %v2542
  %v2544 = vand.u32 %v2075, 4294901760
  %v2545 = vsub.f32 %v2075, %v2544
  %v2546 = vand.u32 %v2545, 4294901760
  %2547 = vmatmul.f32.gmra.mxu0 %v2546
  %v2548 = vpop.f32.mrf.mxu0
  %v2549 = vadd.f32 %v2520, %v2548
  %v2550 = vand.u32 %v2078, 4294901760
  %v2551 = vsub.f32 %v2078, %v2550
  %v2552 = vand.u32 %v2551, 4294901760
  %2553 = vmatmul.f32.gmra.mxu0 %v2552
  %v2554 = vpop.f32.mrf.mxu0
  %v2555 = vadd.f32 %v2525, %v2554
  %2556 = vdwg.mxu0
  %2557 = vmatpush.msra.mxu0 0.0
  %2558 = vmatpush.msra.mxu0 0.0
  %2559 = vmatpush.msra.mxu0 0.0
  %2560 = vmatpush.msra.mxu0 0.0
  %2561 = vmatpush.msra.mxu0 0.0
  %2562 = vmatpush.msra.mxu0 0.0
  %2563 = vmatpush.msra.mxu0 0.0
  %2564 = vmatpush.msra.mxu0 0.0
  %2565 = vmatpush.msra.mxu0 0.0
  %2566 = vmatpush.msra.mxu0 0.0
  %2567 = vmatpush.msra.mxu0 0.0
  %2568 = vmatpush.msra.mxu0 0.0
  %2569 = vmatpush.msra.mxu0 0.0
  %2570 = vmatpush.msra.mxu0 0.0
  %2571 = vmatpush.msra.mxu0 0.0
  %v2572 = vand.u32 %v2059, 4294901760
  %v2573 = vsub.f32 %v2059, %v2572
  %v2574 = vand.u32 %v2573, 4294901760
  %2575 = vmatpush.msra.mxu0 %v2574
  %v2576 = vand.u32 %v2075, 4294901760
  %2577 = vmatmul.f32.gmra.mxu0 %v2576
  %v2578 = vpop.f32.mrf.mxu0
  %v2579 = vadd.f32 %v2549, %v2578
  %v2580 = vand.u32 %v2078, 4294901760
  %2581 = vmatmul.f32.gmra.mxu0 %v2580
  %v2582 = vpop.f32.mrf.mxu0
  %v2583 = vadd.f32 %v2555, %v2582
  %2584 = vdwg.mxu0
  %2585 = vmatpush.msra.mxu0 0.0
  %2586 = vmatpush.msra.mxu0 0.0
  %2587 = vmatpush.msra.mxu0 0.0
  %2588 = vmatpush.msra.mxu0 0.0
  %2589 = vmatpush.msra.mxu0 0.0
  %2590 = vmatpush.msra.mxu0 0.0
  %2591 = vmatpush.msra.mxu0 0.0
  %2592 = vmatpush.msra.mxu0 0.0
  %2593 = vmatpush.msra.mxu0 0.0
  %2594 = vmatpush.msra.mxu0 0.0
  %2595 = vmatpush.msra.mxu0 0.0
  %2596 = vmatpush.msra.mxu0 0.0
  %2597 = vmatpush.msra.mxu0 0.0
  %2598 = vmatpush.msra.mxu0 0.0
  %2599 = vmatpush.msra.mxu0 0.0
  %v2600 = vand.u32 %v2059, 4294901760
  %2601 = vmatpush.msra.mxu0 %v2600
  %v2602 = vand.u32 %v2075, 4294901760
  %2603 = vmatmul.f32.gmra.mxu0 %v2602
  %v2604 = vpop.f32.mrf.mxu0
  %v2605 = vadd.f32 %v2579, %v2604
  %v2606 = vand.u32 %v2078, 4294901760
  %2607 = vmatmul.f32.gmra.mxu0 %v2606
  %v2608 = vpop.f32.mrf.mxu0
  %v2609 = vadd.f32 %v2583, %v2608
  %2610 = vdwg.mxu0
  %2611 = vmatpush.msra.mxu0 0.0
  %2612 = vmatpush.msra.mxu0 0.0
  %2613 = vmatpush.msra.mxu0 0.0
  %2614 = vmatpush.msra.mxu0 0.0
  %2615 = vmatpush.msra.mxu0 0.0
  %2616 = vmatpush.msra.mxu0 0.0
  %2617 = vmatpush.msra.mxu0 0.0
  %2618 = vmatpush.msra.mxu0 0.0
  %2619 = vmatpush.msra.mxu0 0.0
  %2620 = vmatpush.msra.mxu0 0.0
  %2621 = vmatpush.msra.mxu0 0.0
  %2622 = vmatpush.msra.mxu0 0.0
  %2623 = vmatpush.msra.mxu0 0.0
  %2624 = vmatpush.msra.mxu0 0.0
  %2625 = vmatpush.msra.mxu0 0.0
  %v2626 = vand.u32 %v2060, 4294901760
  %2627 = vmatpush.msra.mxu0 %v2626
  %v2628 = vand.u32 %v2075, 4294901760
  %v2629 = vsub.f32 %v2075, %v2628
  %v2630 = vand.u32 %v2629, 4294901760
  %v2631 = vsub.f32 %v2629, %v2630
  %v2632 = vand.u32 %v2631, 4294901760
  %2633 = vmatmul.f32.gmra.mxu0 %v2632
  %v2634 = vpop.f32.mrf.mxu0
  %v2635 = vadd.f32 %v2066, %v2634
  %v2636 = vand.u32 %v2078, 4294901760
  %v2637 = vsub.f32 %v2078, %v2636
  %v2638 = vand.u32 %v2637, 4294901760
  %v2639 = vsub.f32 %v2637, %v2638
  %v2640 = vand.u32 %v2639, 4294901760
  %2641 = vmatmul.f32.gmra.mxu0 %v2640
  %v2642 = vpop.f32.mrf.mxu0
  %v2643 = vadd.f32 %v2071, %v2642
  %2644 = vdwg.mxu0
  %2645 = vmatpush.msra.mxu0 0.0
  %2646 = vmatpush.msra.mxu0 0.0
  %2647 = vmatpush.msra.mxu0 0.0
  %2648 = vmatpush.msra.mxu0 0.0
  %2649 = vmatpush.msra.mxu0 0.0
  %2650 = vmatpush.msra.mxu0 0.0
  %2651 = vmatpush.msra.mxu0 0.0
  %2652 = vmatpush.msra.mxu0 0.0
  %2653 = vmatpush.msra.mxu0 0.0
  %2654 = vmatpush.msra.mxu0 0.0
  %2655 = vmatpush.msra.mxu0 0.0
  %2656 = vmatpush.msra.mxu0 0.0
  %2657 = vmatpush.msra.mxu0 0.0
  %2658 = vmatpush.msra.mxu0 0.0
  %2659 = vmatpush.msra.mxu0 0.0
  %v2660 = vand.u32 %v2060, 4294901760
  %v2661 = vsub.f32 %v2060, %v2660
  %v2662 = vand.u32 %v2661, 4294901760
  %v2663 = vsub.f32 %v2661, %v2662
  %v2664 = vand.u32 %v2663, 4294901760
  %2665 = vmatpush.msra.mxu0 %v2664
  %v2666 = vand.u32 %v2075, 4294901760
  %2667 = vmatmul.f32.gmra.mxu0 %v2666
  %v2668 = vpop.f32.mrf.mxu0
  %v2669 = vadd.f32 %v2635, %v2668
  %v2670 = vand.u32 %v2078, 4294901760
  %2671 = vmatmul.f32.gmra.mxu0 %v2670
  %v2672 = vpop.f32.mrf.mxu0
  %v2673 = vadd.f32 %v2643, %v2672
  %2674 = vdwg.mxu0
  %2675 = vmatpush.msra.mxu0 0.0
  %2676 = vmatpush.msra.mxu0 0.0
  %2677 = vmatpush.msra.mxu0 0.0
  %2678 = vmatpush.msra.mxu0 0.0
  %2679 = vmatpush.msra.mxu0 0.0
  %2680 = vmatpush.msra.mxu0 0.0
  %2681 = vmatpush.msra.mxu0 0.0
  %2682 = vmatpush.msra.mxu0 0.0
  %2683 = vmatpush.msra.mxu0 0.0
  %2684 = vmatpush.msra.mxu0 0.0
  %2685 = vmatpush.msra.mxu0 0.0
  %2686 = vmatpush.msra.mxu0 0.0
  %2687 = vmatpush.msra.mxu0 0.0
  %2688 = vmatpush.msra.mxu0 0.0
  %2689 = vmatpush.msra.mxu0 0.0
  %v2690 = vand.u32 %v2060, 4294901760
  %v2691 = vsub.f32 %v2060, %v2690
  %2692 = vmatpush.msra.mxu0 %v2691
  %v2693 = vand.u32 %v2075, 4294901760
  %v2694 = vsub.f32 %v2075, %v2693
  %2695 = vmatmul.f32.gmra.mxu0 %v2694
  %v2696 = vpop.f32.mrf.mxu0
  %v2697 = vadd.f32 %v2669, %v2696
  %v2698 = vand.u32 %v2078, 4294901760
  %v2699 = vsub.f32 %v2078, %v2698
  %2700 = vmatmul.f32.gmra.mxu0 %v2699
  %v2701 = vpop.f32.mrf.mxu0
  %v2702 = vadd.f32 %v2673, %v2701
  %2703 = vdwg.mxu0
  %2704 = vmatpush.msra.mxu0 0.0
  %2705 = vmatpush.msra.mxu0 0.0
  %2706 = vmatpush.msra.mxu0 0.0
  %2707 = vmatpush.msra.mxu0 0.0
  %2708 = vmatpush.msra.mxu0 0.0
  %2709 = vmatpush.msra.mxu0 0.0
  %2710 = vmatpush.msra.mxu0 0.0
  %2711 = vmatpush.msra.mxu0 0.0
  %2712 = vmatpush.msra.mxu0 0.0
  %2713 = vmatpush.msra.mxu0 0.0
  %2714 = vmatpush.msra.mxu0 0.0
  %2715 = vmatpush.msra.mxu0 0.0
  %2716 = vmatpush.msra.mxu0 0.0
  %2717 = vmatpush.msra.mxu0 0.0
  %2718 = vmatpush.msra.mxu0 0.0
  %v2719 = vand.u32 %v2060, 4294901760
  %2720 = vmatpush.msra.mxu0 %v2719
  %v2721 = vand.u32 %v2075, 4294901760
  %v2722 = vsub.f32 %v2075, %v2721
  %v2723 = vand.u32 %v2722, 4294901760
  %2724 = vmatmul.f32.gmra.mxu0 %v2723
  %v2725 = vpop.f32.mrf.mxu0
  %v2726 = vadd.f32 %v2697, %v2725
  %v2727 = vand.u32 %v2078, 4294901760
  %v2728 = vsub.f32 %v2078, %v2727
  %v2729 = vand.u32 %v2728, 4294901760
  %2730 = vmatmul.f32.gmra.mxu0 %v2729
  %v2731 = vpop.f32.mrf.mxu0
  %v2732 = vadd.f32 %v2702, %v2731
  %2733 = vdwg.mxu0
  %2734 = vmatpush.msra.mxu0 0.0
  %2735 = vmatpush.msra.mxu0 0.0
  %2736 = vmatpush.msra.mxu0 0.0
  %2737 = vmatpush.msra.mxu0 0.0
  %2738 = vmatpush.msra.mxu0 0.0
  %2739 = vmatpush.msra.mxu0 0.0
  %2740 = vmatpush.msra.mxu0 0.0
  %2741 = vmatpush.msra.mxu0 0.0
  %2742 = vmatpush.msra.mxu0 0.0
  %2743 = vmatpush.msra.mxu0 0.0
  %2744 = vmatpush.msra.mxu0 0.0
  %2745 = vmatpush.msra.mxu0 0.0
  %2746 = vmatpush.msra.mxu0 0.0
  %2747 = vmatpush.msra.mxu0 0.0
  %2748 = vmatpush.msra.mxu0 0.0
  %v2749 = vand.u32 %v2060, 4294901760
  %v2750 = vsub.f32 %v2060, %v2749
  %v2751 = vand.u32 %v2750, 4294901760
  %2752 = vmatpush.msra.mxu0 %v2751
  %v2753 = vand.u32 %v2075, 4294901760
  %2754 = vmatmul.f32.gmra.mxu0 %v2753
  %v2755 = vpop.f32.mrf.mxu0
  %v2756 = vadd.f32 %v2726, %v2755
  %v2757 = vand.u32 %v2078, 4294901760
  %2758 = vmatmul.f32.gmra.mxu0 %v2757
  %v2759 = vpop.f32.mrf.mxu0
  %v2760 = vadd.f32 %v2732, %v2759
  %2761 = vdwg.mxu0
  %2762 = vmatpush.msra.mxu0 0.0
  %2763 = vmatpush.msra.mxu0 0.0
  %2764 = vmatpush.msra.mxu0 0.0
  %2765 = vmatpush.msra.mxu0 0.0
  %2766 = vmatpush.msra.mxu0 0.0
  %2767 = vmatpush.msra.mxu0 0.0
  %2768 = vmatpush.msra.mxu0 0.0
  %2769 = vmatpush.msra.mxu0 0.0
  %2770 = vmatpush.msra.mxu0 0.0
  %2771 = vmatpush.msra.mxu0 0.0
  %2772 = vmatpush.msra.mxu0 0.0
  %2773 = vmatpush.msra.mxu0 0.0
  %2774 = vmatpush.msra.mxu0 0.0
  %2775 = vmatpush.msra.mxu0 0.0
  %2776 = vmatpush.msra.mxu0 0.0
  %v2777 = vand.u32 %v2060, 4294901760
  %2778 = vmatpush.msra.mxu0 %v2777
  %v2779 = vand.u32 %v2075, 4294901760
  %2780 = vmatmul.f32.gmra.mxu0 %v2779
  %v2781 = vpop.f32.mrf.mxu0
  %v2782 = vadd.f32 %v2756, %v2781
  %v2783 = vand.u32 %v2078, 4294901760
  %2784 = vmatmul.f32.gmra.mxu0 %v2783
  %v2785 = vpop.f32.mrf.mxu0
  %v2786 = vadd.f32 %v2760, %v2785
  %2787 = vdwg.mxu0
  %v2788 = vmax.f32 %v2251, 0.0
  %v2789 = vmax.f32 %v2428, 0.0
  %v2790 = vmax.f32 %v2605, 0.0
  %v2791 = vmax.f32 %v2782, 0.0
  %v2792 = vmax.f32 %v2255, 0.0
  %v2793 = vmax.f32 %v2432, 0.0
  %v2794 = vmax.f32 %v2609, 0.0
  %v2795 = vmax.f32 %v2786, 0.0
  %2796 = vst [vmem:[%s8] sm:$0xff] %v2788
  %2797 = vst [vmem:[%s8 + $0x8] sm:$0xff] %v2789
  %2798 = vst [vmem:[%s8 + $0x10] sm:$0xff] %v2792
  %2799 = vst [vmem:[%s8 + $0x18] sm:$0xff] %v2793
  %s2800 = scalar_lea.vmem %s8, 32
  %2801 = vst [vmem:[%s2800] sm:$0xff] %v2790
  %2802 = vst [vmem:[%s2800 + $0x8] sm:$0xff] %v2791
  %2803 = vst [vmem:[%s2800 + $0x10] sm:$0xff] %v2794
  %2804 = vst [vmem:[%s2800 + $0x18] sm:$0xff] %v2795
  // Predicated region
  $region34: #{bottleneck_forward.1} parent=0 // pred_check
    _
  $region35: #{bottleneck_forward.1} parent=0 // pred_check_branch
    %2806 = sbr.rel (0) target = $region37
  $region36: #{bottleneck_forward.1} parent=0 // pred_region
    _
  $region37: #{bottleneck_forward.1} parent=0 // pred_fallthru
    _
  // Predicated region
  $region38: #{bottleneck_forward.1} parent=0 // pred_check
    _
  $region39: #{bottleneck_forward.1} parent=0 // pred_check_branch
    %2808 = sbr.rel (0) target = $region41
  $region40: #{bottleneck_forward.1} parent=0 // pred_region
    _
  $region41: #{bottleneck_forward.1} parent=0 // pred_fallthru
    _

</llo_original>
